<compile_context>
chip_gen: v5e
topology: v5e:2x2
jax: 0.10.0
libtpu: 0.0.40
codegen_flags: <defaults>
</compile_context>

<pallas_src>
import math

import jax
import jax.numpy as jnp
from jax.experimental import pallas as pl
from jax.experimental.pallas import tpu as pltpu


D_IN = 23 * 2      # 46 (logical input features)
HID = 256
D_OUT = 23         # logical output features
D_IN_PAD = 128     # lane-dense padded input feature dim
D_OUT_PAD = 128    # lane-dense padded output feature dim


def _round_up(x, m):
    return ((x + m - 1) // m) * m


def _choose_tile_b(batch):
    """Batch tile: multiple of 8, capped at 512, >=2 grid steps when possible."""
    if batch <= 16:
        return _round_up(batch, 8)
    half = _round_up((batch + 1) // 2, 8)
    return min(512, half)


def _mlp_kernel(x_ref,
                w0_ref, b0_ref,
                w1_ref, b1_ref,
                w2_ref, b2_ref,
                w3_ref, b3_ref,
                w4_ref, b4_ref,
                o_ref):
    # x_ref: (tile_b, 128) bf16.  Hidden layers: bf16 x bf16 -> f32 MXU
    # accumulation, bias + ReLU in f32, recast to bf16 for the next matmul.
    h = x_ref[...]
    for w_ref, b_ref in ((w0_ref, b0_ref), (w1_ref, b1_ref),
                         (w2_ref, b2_ref), (w3_ref, b3_ref)):
        acc = jnp.dot(h, w_ref[...], preferred_element_type=jnp.float32)
        h = jnp.maximum(acc + b_ref[...], 0.0).astype(jnp.bfloat16)
    # Final layer: Linear only (no ReLU), f32 output, lane-dense (128 wide).
    acc = jnp.dot(h, w4_ref[...], preferred_element_type=jnp.float32)
    o_ref[...] = (acc + b4_ref[...]).astype(o_ref.dtype)


def mlp_forward(x, params, *, tile_b=None, vmem_limit_bytes=32 * 1024 * 1024):
    """x: [B, 46] float32. params: list of 5 (W[in,out], b[1,out]) f32 pairs."""
    B = x.shape[0]
    assert x.shape[1] == D_IN

    if tile_b is None:
        tile_b = _choose_tile_b(B)
    assert tile_b % 8 == 0

    Bp = _round_up(B, tile_b)

    # Pad batch + input features to lane-dense sizes; activations in bf16.
    xp = jnp.zeros((Bp, D_IN_PAD), jnp.bfloat16)
    xp = xp.at[:B, :D_IN].set(x.astype(jnp.bfloat16))

    (w0, b0), (w1, b1), (w2, b2), (w3, b3), (w4, b4) = params
    # w0: pad K 46 -> 128 with zero rows; w4/b4: pad N 23 -> 128 with zero cols.
    w0p = jnp.zeros((D_IN_PAD, HID), jnp.bfloat16).at[:D_IN, :].set(
        w0.astype(jnp.bfloat16))
    w4p = jnp.zeros((HID, D_OUT_PAD), jnp.bfloat16).at[:, :D_OUT].set(
        w4.astype(jnp.bfloat16))
    b4p = jnp.zeros((1, D_OUT_PAD), jnp.float32).at[:, :D_OUT].set(
        b4.astype(jnp.float32))

    flat = [xp,
            w0p, b0.astype(jnp.float32),
            w1.astype(jnp.bfloat16), b1.astype(jnp.float32),
            w2.astype(jnp.bfloat16), b2.astype(jnp.float32),
            w3.astype(jnp.bfloat16), b3.astype(jnp.float32),
            w4p, b4p]

    in_specs = [pl.BlockSpec((tile_b, D_IN_PAD), lambda i: (i, 0))]
    for arr in flat[1:]:
        # Full-array blocks for weights / biases; constant index map -> DMA'd
        # once, kept resident in VMEM across the batch grid.
        in_specs.append(pl.BlockSpec(arr.shape, lambda i: (0, 0)))

    grid = (Bp // tile_b,)

    flops = 2 * Bp * (D_IN_PAD * HID + 3 * HID * HID + HID * D_OUT_PAD)
    bytes_accessed = (sum(int(a.size) * a.dtype.itemsize for a in flat)
                      + Bp * D_OUT_PAD * 4)

    out = pl.pallas_call(
        _mlp_kernel,
        out_shape=jax.ShapeDtypeStruct((Bp, D_OUT_PAD), jnp.float32),
        grid_spec=pltpu.PrefetchScalarGridSpec(
            num_scalar_prefetch=0,
            grid=grid,
            in_specs=in_specs,
            out_specs=pl.BlockSpec((tile_b, D_OUT_PAD), lambda i: (i, 0)),
        ),
        compiler_params=pltpu.CompilerParams(
            dimension_semantics=("parallel",),
            vmem_limit_bytes=vmem_limit_bytes),
        cost_estimate=pl.CostEstimate(
            flops=flops, transcendentals=0, bytes_accessed=bytes_accessed),
    )(*flat)

    # Strip batch + output-feature padding.
    return out[:B, :D_OUT]


def init_params(key):
    """Deterministic init matching nn.Linear's default U(-1/sqrt(fan_in), +...)."""
    dims = [(D_IN, HID), (HID, HID), (HID, HID), (HID, HID), (HID, D_OUT)]
    params = []
    for (fan_in, fan_out) in dims:
        key, kw, kb = jax.random.split(key, 3)
        bound = 1.0 / math.sqrt(fan_in)
        w = jax.random.uniform(kw, (fan_in, fan_out), jnp.float32, -bound, bound)
        b = jax.random.uniform(kb, (1, fan_out), jnp.float32, -bound, bound)
        params.append((w, b))
    return params


def mlp_reference(x, params, *, matmul_dtype=jnp.float32):
    """Pure-JAX reference. matmul_dtype=bf16 mirrors the kernel's numerics."""
    h = x
    for i, (w, b) in enumerate(params):
        acc = jnp.dot(h.astype(matmul_dtype), w.astype(matmul_dtype),
                      preferred_element_type=jnp.float32) + b
        h = acc if i == len(params) - 1 else jnp.maximum(acc, 0.0)
    return h


if __name__ == "__main__":
    key = jax.random.PRNGKey(0)
    key, kx = jax.random.split(key)

    # Small problem, but large enough that tile_b=128 gives a 2-step grid
    # (exercises batch tiling / both v7x TensorCores).
    B = 256
    x = jax.random.normal(kx, (B, D_IN), jnp.float32)
    params = init_params(key)

    out = jax.block_until_ready(mlp_forward(x, params))
    assert out.shape == (B, D_OUT)

    # Tight check against a reference that mirrors the kernel's numerics
    # (bf16 matmul inputs, f32 accumulation).
    ref_bf16 = mlp_reference(x, params, matmul_dtype=jnp.bfloat16)
    assert jnp.allclose(out, ref_bf16, atol=1e-2, rtol=1e-2), \
        "mismatch vs bf16-matmul reference"

    # Looser check against the pure-f32 reference (semantics sanity).
    ref_f32 = mlp_reference(x, params, matmul_dtype=jnp.float32)
    assert jnp.allclose(out, ref_f32, atol=1e-1, rtol=1e-1), \
        "mismatch vs f32 reference"

    print("KERNEL_OK")
</pallas_src>

<mosaic_0001>
module attributes {stable_mosaic.version = 11 : i64} {
  func.func @_mlp_kernel(%arg0: i32, %arg1: memref<128x128xbf16, #tpu.memory_space<vmem>>, %arg2: memref<128x256xbf16, #tpu.memory_space<vmem>>, %arg3: memref<1x256xf32, #tpu.memory_space<vmem>>, %arg4: memref<256x256xbf16, #tpu.memory_space<vmem>>, %arg5: memref<1x256xf32, #tpu.memory_space<vmem>>, %arg6: memref<256x256xbf16, #tpu.memory_space<vmem>>, %arg7: memref<1x256xf32, #tpu.memory_space<vmem>>, %arg8: memref<256x256xbf16, #tpu.memory_space<vmem>>, %arg9: memref<1x256xf32, #tpu.memory_space<vmem>>, %arg10: memref<256x128xbf16, #tpu.memory_space<vmem>>, %arg11: memref<1x128xf32, #tpu.memory_space<vmem>>, %arg12: memref<128x128xf32, #tpu.memory_space<vmem>>) attributes {dimension_semantics = [#tpu.dimension_semantics<parallel>], iteration_bounds = array<i64: 2>, scalar_prefetch = 0 : i64, scratch_operands = 0 : i64, tpu.core_type = #tpu.core_type<tc>, window_params = [{transform_indices = @transform_0, window_bounds = array<i64: 128, 128>}, {pipeline_mode = #tpu.pipeline_mode<synchronous>, transform_indices = @transform_1, window_bounds = array<i64: 128, 256>}, {pipeline_mode = #tpu.pipeline_mode<synchronous>, transform_indices = @transform_2, window_bounds = array<i64: 1, 256>}, {pipeline_mode = #tpu.pipeline_mode<synchronous>, transform_indices = @transform_3, window_bounds = array<i64: 256, 256>}, {pipeline_mode = #tpu.pipeline_mode<synchronous>, transform_indices = @transform_4, window_bounds = array<i64: 1, 256>}, {pipeline_mode = #tpu.pipeline_mode<synchronous>, transform_indices = @transform_5, window_bounds = array<i64: 256, 256>}, {pipeline_mode = #tpu.pipeline_mode<synchronous>, transform_indices = @transform_6, window_bounds = array<i64: 1, 256>}, {pipeline_mode = #tpu.pipeline_mode<synchronous>, transform_indices = @transform_7, window_bounds = array<i64: 256, 256>}, {pipeline_mode = #tpu.pipeline_mode<synchronous>, transform_indices = @transform_8, window_bounds = array<i64: 1, 256>}, {pipeline_mode = #tpu.pipeline_mode<synchronous>, transform_indices = @transform_9, window_bounds = array<i64: 256, 128>}, {pipeline_mode = #tpu.pipeline_mode<synchronous>, transform_indices = @transform_10, window_bounds = array<i64: 1, 128>}, {transform_indices = @transform_11, window_bounds = array<i64: 128, 128>}]} {
    %c0 = arith.constant 0 : index
    %c0_0 = arith.constant 0 : index
    %0 = vector.load %arg1[%c0, %c0_0] : memref<128x128xbf16, #tpu.memory_space<vmem>>, vector<128x128xbf16>
    %c0_1 = arith.constant 0 : index
    %c0_2 = arith.constant 0 : index
    %1 = vector.load %arg2[%c0_1, %c0_2] : memref<128x256xbf16, #tpu.memory_space<vmem>>, vector<128x256xbf16>
    %cst = arith.constant dense<0.000000e+00> : vector<128x256xf32>
    %2 = tpu.matmul %0, %1, %cst {dimension_numbers = #tpu.dot_dimension_numbers<[1], [0], [0], [1], [0, 0, 1, 1], [], []>} : vector<128x128xbf16>, vector<128x256xbf16>, vector<128x256xf32> -> vector<128x256xf32>
    %c0_3 = arith.constant 0 : index
    %c0_4 = arith.constant 0 : index
    %3 = vector.load %arg3[%c0_3, %c0_4] : memref<1x256xf32, #tpu.memory_space<vmem>>, vector<1x256xf32>
    %4 = vector.broadcast %3 : vector<1x256xf32> to vector<128x256xf32>
    %5 = arith.addf %2, %4 : vector<128x256xf32>
    %cst_5 = arith.constant 0.000000e+00 : f32
    %6 = vector.broadcast %cst_5 : f32 to vector<128x256xf32>
    %7 = arith.maximumf %5, %6 : vector<128x256xf32>
    %8 = arith.truncf %7 : vector<128x256xf32> to vector<128x256xbf16>
    %c0_6 = arith.constant 0 : index
    %c0_7 = arith.constant 0 : index
    %9 = vector.load %arg4[%c0_6, %c0_7] : memref<256x256xbf16, #tpu.memory_space<vmem>>, vector<256x256xbf16>
    %cst_8 = arith.constant dense<0.000000e+00> : vector<128x256xf32>
    %10 = tpu.matmul %8, %9, %cst_8 {dimension_numbers = #tpu.dot_dimension_numbers<[1], [0], [0], [1], [0, 0, 1, 1], [], []>} : vector<128x256xbf16>, vector<256x256xbf16>, vector<128x256xf32> -> vector<128x256xf32>
    %c0_9 = arith.constant 0 : index
    %c0_10 = arith.constant 0 : index
    %11 = vector.load %arg5[%c0_9, %c0_10] : memref<1x256xf32, #tpu.memory_space<vmem>>, vector<1x256xf32>
    %12 = vector.broadcast %11 : vector<1x256xf32> to vector<128x256xf32>
    %13 = arith.addf %10, %12 : vector<128x256xf32>
    %cst_11 = arith.constant 0.000000e+00 : f32
    %14 = vector.broadcast %cst_11 : f32 to vector<128x256xf32>
    %15 = arith.maximumf %13, %14 : vector<128x256xf32>
    %16 = arith.truncf %15 : vector<128x256xf32> to vector<128x256xbf16>
    %c0_12 = arith.constant 0 : index
    %c0_13 = arith.constant 0 : index
    %17 = vector.load %arg6[%c0_12, %c0_13] : memref<256x256xbf16, #tpu.memory_space<vmem>>, vector<256x256xbf16>
    %cst_14 = arith.constant dense<0.000000e+00> : vector<128x256xf32>
    %18 = tpu.matmul %16, %17, %cst_14 {dimension_numbers = #tpu.dot_dimension_numbers<[1], [0], [0], [1], [0, 0, 1, 1], [], []>} : vector<128x256xbf16>, vector<256x256xbf16>, vector<128x256xf32> -> vector<128x256xf32>
    %c0_15 = arith.constant 0 : index
    %c0_16 = arith.constant 0 : index
    %19 = vector.load %arg7[%c0_15, %c0_16] : memref<1x256xf32, #tpu.memory_space<vmem>>, vector<1x256xf32>
    %20 = vector.broadcast %19 : vector<1x256xf32> to vector<128x256xf32>
    %21 = arith.addf %18, %20 : vector<128x256xf32>
    %cst_17 = arith.constant 0.000000e+00 : f32
    %22 = vector.broadcast %cst_17 : f32 to vector<128x256xf32>
    %23 = arith.maximumf %21, %22 : vector<128x256xf32>
    %24 = arith.truncf %23 : vector<128x256xf32> to vector<128x256xbf16>
    %c0_18 = arith.constant 0 : index
    %c0_19 = arith.constant 0 : index
    %25 = vector.load %arg8[%c0_18, %c0_19] : memref<256x256xbf16, #tpu.memory_space<vmem>>, vector<256x256xbf16>
    %cst_20 = arith.constant dense<0.000000e+00> : vector<128x256xf32>
    %26 = tpu.matmul %24, %25, %cst_20 {dimension_numbers = #tpu.dot_dimension_numbers<[1], [0], [0], [1], [0, 0, 1, 1], [], []>} : vector<128x256xbf16>, vector<256x256xbf16>, vector<128x256xf32> -> vector<128x256xf32>
    %c0_21 = arith.constant 0 : index
    %c0_22 = arith.constant 0 : index
    %27 = vector.load %arg9[%c0_21, %c0_22] : memref<1x256xf32, #tpu.memory_space<vmem>>, vector<1x256xf32>
    %28 = vector.broadcast %27 : vector<1x256xf32> to vector<128x256xf32>
    %29 = arith.addf %26, %28 : vector<128x256xf32>
    %cst_23 = arith.constant 0.000000e+00 : f32
    %30 = vector.broadcast %cst_23 : f32 to vector<128x256xf32>
    %31 = arith.maximumf %29, %30 : vector<128x256xf32>
    %32 = arith.truncf %31 : vector<128x256xf32> to vector<128x256xbf16>
    %c0_24 = arith.constant 0 : index
    %c0_25 = arith.constant 0 : index
    %33 = vector.load %arg10[%c0_24, %c0_25] : memref<256x128xbf16, #tpu.memory_space<vmem>>, vector<256x128xbf16>
    %cst_26 = arith.constant dense<0.000000e+00> : vector<128x128xf32>
    %34 = tpu.matmul %32, %33, %cst_26 {dimension_numbers = #tpu.dot_dimension_numbers<[1], [0], [0], [1], [0, 0, 1, 1], [], []>} : vector<128x256xbf16>, vector<256x128xbf16>, vector<128x128xf32> -> vector<128x128xf32>
    %c0_27 = arith.constant 0 : index
    %c0_28 = arith.constant 0 : index
    %35 = vector.load %arg11[%c0_27, %c0_28] : memref<1x128xf32, #tpu.memory_space<vmem>>, vector<1x128xf32>
    %36 = vector.broadcast %35 : vector<1x128xf32> to vector<128x128xf32>
    %37 = arith.addf %34, %36 : vector<128x128xf32>
    %c0_29 = arith.constant 0 : index
    %c0_30 = arith.constant 0 : index
    %38 = vector.load %arg12[%c0_29, %c0_30] : memref<128x128xf32, #tpu.memory_space<vmem>>, vector<128x128xf32>
    tpu.vector_store %arg12[%c0_29, %c0_30], %37 {strides = array<i32>} : memref<128x128xf32, #tpu.memory_space<vmem>>, vector<128x128xf32>,
    return
  }
  func.func @transform_0(%arg0: i32) -> (i32, i32) {
    %c0_i32 = arith.constant 0 : i32
    %c0_i32_0 = arith.constant 0 : i32
    return %arg0, %c0_i32 : i32, i32
  }
  func.func @transform_1(%arg0: i32) -> (i32, i32) {
    %c0_i32 = arith.constant 0 : i32
    %c0_i32_0 = arith.constant 0 : i32
    %c0_i32_1 = arith.constant 0 : i32
    return %c0_i32, %c0_i32_0 : i32, i32
  }
  func.func @transform_2(%arg0: i32) -> (i32, i32) {
    %c0_i32 = arith.constant 0 : i32
    %c0_i32_0 = arith.constant 0 : i32
    %c0_i32_1 = arith.constant 0 : i32
    return %c0_i32, %c0_i32_0 : i32, i32
  }
  func.func @transform_3(%arg0: i32) -> (i32, i32) {
    %c0_i32 = arith.constant 0 : i32
    %c0_i32_0 = arith.constant 0 : i32
    %c0_i32_1 = arith.constant 0 : i32
    return %c0_i32, %c0_i32_0 : i32, i32
  }
  func.func @transform_4(%arg0: i32) -> (i32, i32) {
    %c0_i32 = arith.constant 0 : i32
    %c0_i32_0 = arith.constant 0 : i32
    %c0_i32_1 = arith.constant 0 : i32
    return %c0_i32, %c0_i32_0 : i32, i32
  }
  func.func @transform_5(%arg0: i32) -> (i32, i32) {
    %c0_i32 = arith.constant 0 : i32
    %c0_i32_0 = arith.constant 0 : i32
    %c0_i32_1 = arith.constant 0 : i32
    return %c0_i32, %c0_i32_0 : i32, i32
  }
  func.func @transform_6(%arg0: i32) -> (i32, i32) {
    %c0_i32 = arith.constant 0 : i32
    %c0_i32_0 = arith.constant 0 : i32
    %c0_i32_1 = arith.constant 0 : i32
    return %c0_i32, %c0_i32_0 : i32, i32
  }
  func.func @transform_7(%arg0: i32) -> (i32, i32) {
    %c0_i32 = arith.constant 0 : i32
    %c0_i32_0 = arith.constant 0 : i32
    %c0_i32_1 = arith.constant 0 : i32
    return %c0_i32, %c0_i32_0 : i32, i32
  }
  func.func @transform_8(%arg0: i32) -> (i32, i32) {
    %c0_i32 = arith.constant 0 : i32
    %c0_i32_0 = arith.constant 0 : i32
    %c0_i32_1 = arith.constant 0 : i32
    return %c0_i32, %c0_i32_0 : i32, i32
  }
  func.func @transform_9(%arg0: i32) -> (i32, i32) {
    %c0_i32 = arith.constant 0 : i32
    %c0_i32_0 = arith.constant 0 : i32
    %c0_i32_1 = arith.constant 0 : i32
    return %c0_i32, %c0_i32_0 : i32, i32
  }
  func.func @transform_10(%arg0: i32) -> (i32, i32) {
    %c0_i32 = arith.constant 0 : i32
    %c0_i32_0 = arith.constant 0 : i32
    %c0_i32_1 = arith.constant 0 : i32
    return %c0_i32, %c0_i32_0 : i32, i32
  }
  func.func @transform_11(%arg0: i32) -> (i32, i32) {
    %c0_i32 = arith.constant 0 : i32
    %c0_i32_0 = arith.constant 0 : i32
    return %arg0, %c0_i32 : i32, i32
  }
}

</mosaic_0001>

<llo_original>
// kernel: tpu_custom_call.1
$region0: #{tpu_custom_call.1}
  #allocation0 [shape = 'u32[]', space=smem, size = 0x4, offset = 0x4, fixed_abs, tag = 'smem constant byte address 0x4 - core index']
  #allocation1 [shape = 'u32[72,128]{1,0:T(1,128)}', space=vmem, size = 0x9000, scoped, tag = 'internal scratch']
  %s0 = inlined_call_operand.hbm [shape: bf16[256,128], index: 0, kind: input, shape index: {}]
  %s1 = inlined_call_operand.hbm [shape: bf16[128,256], index: 1, kind: input, shape index: {}]
  %s2 = inlined_call_operand.hbm [shape: f32[1,256], index: 2, kind: input, shape index: {}]
  %s3 = inlined_call_operand.hbm [shape: bf16[256,256], index: 3, kind: input, shape index: {}]
  %s4 = inlined_call_operand.vmem [shape: f32[1,256], index: 4, kind: input, shape index: {}]
  %s5 = inlined_call_operand.hbm [shape: bf16[256,256], index: 5, kind: input, shape index: {}]
  %s6 = inlined_call_operand.vmem [shape: f32[1,256], index: 6, kind: input, shape index: {}]
  %s7 = inlined_call_operand.hbm [shape: bf16[256,256], index: 7, kind: input, shape index: {}]
  %s8 = inlined_call_operand.vmem [shape: f32[1,256], index: 8, kind: input, shape index: {}]
  %s9 = inlined_call_operand.hbm [shape: bf16[256,128], index: 9, kind: input, shape index: {}]
  %s10 = inlined_call_operand.vmem [shape: f32[1,128], index: 10, kind: input, shape index: {}]
  %s11 = inlined_call_operand.hbm [shape: f32[256,128], index: 11, kind: output, shape index: {}]
  %s12 = sld [smem:[#allocation0]]
  $region105: #{tpu_custom_call.1} parent=0
    _
  %s14 = ssub.s32 1, %s12
  %s15 = scalar_select 0, %s14, %s12
  $region1: #{tpu_custom_call.1} parent=0
    #allocation2 [shape = 'u8[65536]{0}', space=vmem, size = 0x10000, scoped, tag = 'input window, operand 0']
    #allocation3 [shape = 's32[2]{0}', space=sflag, size = 0x8, scoped, tag = 'scoped memory for tpu_custom_call.1']
    #allocation4 [shape = 's32[2]{0}', space=sflag, size = 0x8, scoped, tag = 'scoped memory for tpu_custom_call.1']
    #allocation5 [shape = 'u8[65536]{0}', space=vmem, size = 0x10000, scoped, tag = 'input window, operand 1, single buffered']
    #allocation6 [shape = 's32[1]{0}', space=sflag, size = 0x4, scoped, tag = 'scoped memory for tpu_custom_call.1']
    #allocation7 [shape = 'u8[1024]{0}', space=vmem, size = 0x400, scoped, tag = 'input window, operand 2, single buffered']
    #allocation8 [shape = 'u8[131072]{0}', space=vmem, size = 0x20000, scoped, tag = 'input window, operand 3, single buffered']
    #allocation9 [shape = 's32[1]{0}', space=sflag, size = 0x4, scoped, tag = 'scoped memory for tpu_custom_call.1']
    #allocation10 [shape = 'u8[131072]{0}', space=vmem, size = 0x20000, scoped, tag = 'input window, operand 5, single buffered']
    #allocation11 [shape = 'u8[131072]{0}', space=vmem, size = 0x20000, scoped, tag = 'input window, operand 7, single buffered']
    #allocation12 [shape = 's32[1]{0}', space=sflag, size = 0x4, scoped, tag = 'scoped memory for tpu_custom_call.1']
    #allocation13 [shape = 'u8[65536]{0}', space=vmem, size = 0x10000, scoped, tag = 'input window, operand 9, single buffered']
    #allocation14 [shape = 'u8[131072]{0}', space=vmem, size = 0x20000, scoped, tag = 'output window, operand 0']
    %16 = vsyncpa [#allocation3], 0
    %s17 = scalar_lea.sflag [#allocation3], 1
    %18 = vsyncpa %s17, 0
    %19 = vsyncpa [#allocation6], 0
    %20 = vsyncpa [#allocation9], 0
    %21 = vsyncpa [#allocation12], 0
    %22 = vsyncpa [#allocation4], 0
    %s23 = scalar_lea.sflag [#allocation4], 1
    %24 = vsyncpa %s23, 0
    loop: start=0, step=1, limit=4
    $region2: #{tpu_custom_call.1} parent=1 // loop_pre_header
      _
    $region3: #{tpu_custom_call.1} parent=1 // loop_header
      %s26 = sphi 0, %s30
      %p27 = scmp.ge.s32.totalorder %s26, 4
      %s36 = sphi 0, %s38
      %s39 = sphi 0, %s36
      %s40 = sphi 0, %s39
      %s56 = sphi 0, %s40
      %s60 = sphi 0, %s60
      %s62 = sphi 0, %s60
      %s63 = sphi 0, %s62
      %s77 = sphi 0, %s63
      %s81 = sphi 0, %s81
      %s83 = sphi 0, %s81
      %s84 = sphi 0, %s83
      %s98 = sphi 0, %s84
      %s102 = sphi 0, %s102
      %s104 = sphi 0, %s102
      %s105 = sphi 0, %s104
      %s119 = sphi 0, %s105
      %s123 = sphi 0, %s123
      %s125 = sphi 0, %s123
      %s126 = sphi 0, %s125
      %s140 = sphi 0, %s126
      %s144 = sphi 0, %s144
      %s146 = sphi 0, %s144
      %s147 = sphi 0, %s146
      %s161 = sphi 0, %s147
      %s165 = sphi 0, %s165
      %s167 = sphi 0, %s165
      %s168 = sphi 0, %s167
      %s182 = sphi 0, %s168
      %s186 = sphi 0, %s186
      %s188 = sphi 0, %s186
      %s189 = sphi 0, %s188
      %s203 = sphi 0, %s189
      %s207 = sphi 0, %s207
      %s209 = sphi 0, %s207
      %s210 = sphi 0, %s209
      %s224 = sphi 0, %s210
      %s228 = sphi 0, %s228
      %s230 = sphi 0, %s228
      %s231 = sphi 0, %s230
      %s245 = sphi 0, %s231
      %s249 = sphi 0, %s249
      %s251 = sphi 0, %s249
      %s252 = sphi 0, %s251
      %s266 = sphi 0, %s252
      %s272 = sphi 0, %s274
      %s275 = sphi 0, %s272
      %s276 = sphi 0, %s275
      %s292 = sphi 0, %s276
    $region4: #{tpu_custom_call.1} parent=1 // loop_header_branch
      %29 = sbr.rel (%p27) target = $region8
    $region5: #{tpu_custom_call.1} parent=1 // loop_body
      %s31 = ssub.s32 %s26, 1
      %s32 = ssub.s32 %s26, 2
      %s33 = sadd.s32 %s26, 1
      %s34 = ssub.s32 %s26, %s33
      %p35 = scmp.eq.s32.totalorder %s34, 0
      %s37 = sadd.s32 %s36, 1
      %s38 = scalar_select %p35, %s36, %s37
      %p41 = pneg %p35
      %p42 = scmp.eq.s32.totalorder %s26, 1
      %p43 = por %p41, %p42
      %p44 = scmp.ne.s32.totalorder %s36, %s39
      %p45 = scmp.eq.s32.totalorder %s26, 0
      %p46 = por %p44, %p45
      %p47 = scmp.ne.s32.totalorder %s36, %s39
      %p48 = scmp.eq.s32.totalorder %s31, 1
      %p49 = por %p47, %p48
      %p50 = scmp.ne.s32.totalorder %s39, %s40
      %p51 = scmp.eq.s32.totalorder %s31, 0
      %p52 = por %p50, %p51
      %p53 = scmp.ne.s32.totalorder %s39, %s40
      %p54 = scmp.eq.s32.totalorder %s32, 1
      %p55 = por %p53, %p54
      %p57 = scmp.ne.s32.totalorder %s40, %s56
      %p58 = scmp.eq.s32.totalorder %s32, 0
      %p59 = por %p57, %p58
      %s61 = sadd.s32 %s60, 1
      %p64 = scmp.eq.s32.totalorder %s26, 1
      %p65 = scmp.ne.s32.totalorder %s60, %s62
      %p66 = scmp.eq.s32.totalorder %s26, 0
      %p67 = por %p65, %p66
      %p68 = scmp.ne.s32.totalorder %s60, %s62
      %p69 = scmp.eq.s32.totalorder %s31, 1
      %p70 = por %p68, %p69
      %p71 = scmp.ne.s32.totalorder %s62, %s63
      %p72 = scmp.eq.s32.totalorder %s31, 0
      %p73 = por %p71, %p72
      %p74 = scmp.ne.s32.totalorder %s62, %s63
      %p75 = scmp.eq.s32.totalorder %s32, 1
      %p76 = por %p74, %p75
      %p78 = scmp.ne.s32.totalorder %s63, %s77
      %p79 = scmp.eq.s32.totalorder %s32, 0
      %p80 = por %p78, %p79
      %s82 = sadd.s32 %s81, 1
      %p85 = scmp.eq.s32.totalorder %s26, 1
      %p86 = scmp.ne.s32.totalorder %s81, %s83
      %p87 = scmp.eq.s32.totalorder %s26, 0
      %p88 = por %p86, %p87
      %p89 = scmp.ne.s32.totalorder %s81, %s83
      %p90 = scmp.eq.s32.totalorder %s31, 1
      %p91 = por %p89, %p90
      %p92 = scmp.ne.s32.totalorder %s83, %s84
      %p93 = scmp.eq.s32.totalorder %s31, 0
      %p94 = por %p92, %p93
      %p95 = scmp.ne.s32.totalorder %s83, %s84
      %p96 = scmp.eq.s32.totalorder %s32, 1
      %p97 = por %p95, %p96
      %p99 = scmp.ne.s32.totalorder %s84, %s98
      %p100 = scmp.eq.s32.totalorder %s32, 0
      %p101 = por %p99, %p100
      %s103 = sadd.s32 %s102, 1
      %p106 = scmp.eq.s32.totalorder %s26, 1
      %p107 = scmp.ne.s32.totalorder %s102, %s104
      %p108 = scmp.eq.s32.totalorder %s26, 0
      %p109 = por %p107, %p108
      %p110 = scmp.ne.s32.totalorder %s102, %s104
      %p111 = scmp.eq.s32.totalorder %s31, 1
      %p112 = por %p110, %p111
      %p113 = scmp.ne.s32.totalorder %s104, %s105
      %p114 = scmp.eq.s32.totalorder %s31, 0
      %p115 = por %p113, %p114
      %p116 = scmp.ne.s32.totalorder %s104, %s105
      %p117 = scmp.eq.s32.totalorder %s32, 1
      %p118 = por %p116, %p117
      %p120 = scmp.ne.s32.totalorder %s105, %s119
      %p121 = scmp.eq.s32.totalorder %s32, 0
      %p122 = por %p120, %p121
      %s124 = sadd.s32 %s123, 1
      %p127 = scmp.eq.s32.totalorder %s26, 1
      %p128 = scmp.ne.s32.totalorder %s123, %s125
      %p129 = scmp.eq.s32.totalorder %s26, 0
      %p130 = por %p128, %p129
      %p131 = scmp.ne.s32.totalorder %s123, %s125
      %p132 = scmp.eq.s32.totalorder %s31, 1
      %p133 = por %p131, %p132
      %p134 = scmp.ne.s32.totalorder %s125, %s126
      %p135 = scmp.eq.s32.totalorder %s31, 0
      %p136 = por %p134, %p135
      %p137 = scmp.ne.s32.totalorder %s125, %s126
      %p138 = scmp.eq.s32.totalorder %s32, 1
      %p139 = por %p137, %p138
      %p141 = scmp.ne.s32.totalorder %s126, %s140
      %p142 = scmp.eq.s32.totalorder %s32, 0
      %p143 = por %p141, %p142
      %s145 = sadd.s32 %s144, 1
      %p148 = scmp.eq.s32.totalorder %s26, 1
      %p149 = scmp.ne.s32.totalorder %s144, %s146
      %p150 = scmp.eq.s32.totalorder %s26, 0
      %p151 = por %p149, %p150
      %p152 = scmp.ne.s32.totalorder %s144, %s146
      %p153 = scmp.eq.s32.totalorder %s31, 1
      %p154 = por %p152, %p153
      %p155 = scmp.ne.s32.totalorder %s146, %s147
      %p156 = scmp.eq.s32.totalorder %s31, 0
      %p157 = por %p155, %p156
      %p158 = scmp.ne.s32.totalorder %s146, %s147
      %p159 = scmp.eq.s32.totalorder %s32, 1
      %p160 = por %p158, %p159
      %p162 = scmp.ne.s32.totalorder %s147, %s161
      %p163 = scmp.eq.s32.totalorder %s32, 0
      %p164 = por %p162, %p163
      %s166 = sadd.s32 %s165, 1
      %p169 = scmp.eq.s32.totalorder %s26, 1
      %p170 = scmp.ne.s32.totalorder %s165, %s167
      %p171 = scmp.eq.s32.totalorder %s26, 0
      %p172 = por %p170, %p171
      %p173 = scmp.ne.s32.totalorder %s165, %s167
      %p174 = scmp.eq.s32.totalorder %s31, 1
      %p175 = por %p173, %p174
      %p176 = scmp.ne.s32.totalorder %s167, %s168
      %p177 = scmp.eq.s32.totalorder %s31, 0
      %p178 = por %p176, %p177
      %p179 = scmp.ne.s32.totalorder %s167, %s168
      %p180 = scmp.eq.s32.totalorder %s32, 1
      %p181 = por %p179, %p180
      %p183 = scmp.ne.s32.totalorder %s168, %s182
      %p184 = scmp.eq.s32.totalorder %s32, 0
      %p185 = por %p183, %p184
      %s187 = sadd.s32 %s186, 1
      %p190 = scmp.eq.s32.totalorder %s26, 1
      %p191 = scmp.ne.s32.totalorder %s186, %s188
      %p192 = scmp.eq.s32.totalorder %s26, 0
      %p193 = por %p191, %p192
      %p194 = scmp.ne.s32.totalorder %s186, %s188
      %p195 = scmp.eq.s32.totalorder %s31, 1
      %p196 = por %p194, %p195
      %p197 = scmp.ne.s32.totalorder %s188, %s189
      %p198 = scmp.eq.s32.totalorder %s31, 0
      %p199 = por %p197, %p198
      %p200 = scmp.ne.s32.totalorder %s188, %s189
      %p201 = scmp.eq.s32.totalorder %s32, 1
      %p202 = por %p200, %p201
      %p204 = scmp.ne.s32.totalorder %s189, %s203
      %p205 = scmp.eq.s32.totalorder %s32, 0
      %p206 = por %p204, %p205
      %s208 = sadd.s32 %s207, 1
      %p211 = scmp.eq.s32.totalorder %s26, 1
      %p212 = scmp.ne.s32.totalorder %s207, %s209
      %p213 = scmp.eq.s32.totalorder %s26, 0
      %p214 = por %p212, %p213
      %p215 = scmp.ne.s32.totalorder %s207, %s209
      %p216 = scmp.eq.s32.totalorder %s31, 1
      %p217 = por %p215, %p216
      %p218 = scmp.ne.s32.totalorder %s209, %s210
      %p219 = scmp.eq.s32.totalorder %s31, 0
      %p220 = por %p218, %p219
      %p221 = scmp.ne.s32.totalorder %s209, %s210
      %p222 = scmp.eq.s32.totalorder %s32, 1
      %p223 = por %p221, %p222
      %p225 = scmp.ne.s32.totalorder %s210, %s224
      %p226 = scmp.eq.s32.totalorder %s32, 0
      %p227 = por %p225, %p226
      %s229 = sadd.s32 %s228, 1
      %p232 = scmp.eq.s32.totalorder %s26, 1
      %p233 = scmp.ne.s32.totalorder %s228, %s230
      %p234 = scmp.eq.s32.totalorder %s26, 0
      %p235 = por %p233, %p234
      %p236 = scmp.ne.s32.totalorder %s228, %s230
      %p237 = scmp.eq.s32.totalorder %s31, 1
      %p238 = por %p236, %p237
      %p239 = scmp.ne.s32.totalorder %s230, %s231
      %p240 = scmp.eq.s32.totalorder %s31, 0
      %p241 = por %p239, %p240
      %p242 = scmp.ne.s32.totalorder %s230, %s231
      %p243 = scmp.eq.s32.totalorder %s32, 1
      %p244 = por %p242, %p243
      %p246 = scmp.ne.s32.totalorder %s231, %s245
      %p247 = scmp.eq.s32.totalorder %s32, 0
      %p248 = por %p246, %p247
      %s250 = sadd.s32 %s249, 1
      %p253 = scmp.eq.s32.totalorder %s26, 1
      %p254 = scmp.ne.s32.totalorder %s249, %s251
      %p255 = scmp.eq.s32.totalorder %s26, 0
      %p256 = por %p254, %p255
      %p257 = scmp.ne.s32.totalorder %s249, %s251
      %p258 = scmp.eq.s32.totalorder %s31, 1
      %p259 = por %p257, %p258
      %p260 = scmp.ne.s32.totalorder %s251, %s252
      %p261 = scmp.eq.s32.totalorder %s31, 0
      %p262 = por %p260, %p261
      %p263 = scmp.ne.s32.totalorder %s251, %s252
      %p264 = scmp.eq.s32.totalorder %s32, 1
      %p265 = por %p263, %p264
      %p267 = scmp.ne.s32.totalorder %s252, %s266
      %p268 = scmp.eq.s32.totalorder %s32, 0
      %p269 = por %p267, %p268
      %s270 = ssub.s32 %s26, %s33
      %p271 = scmp.eq.s32.totalorder %s270, 0
      %s273 = sadd.s32 %s272, 1
      %s274 = scalar_select %p271, %s272, %s273
      %p277 = pneg %p271
      %p278 = scmp.eq.s32.totalorder %s26, 1
      %p279 = por %p277, %p278
      %p280 = scmp.ne.s32.totalorder %s272, %s275
      %p281 = scmp.eq.s32.totalorder %s26, 0
      %p282 = por %p280, %p281
      %p283 = scmp.ne.s32.totalorder %s272, %s275
      %p284 = scmp.eq.s32.totalorder %s31, 1
      %p285 = por %p283, %p284
      %p286 = scmp.ne.s32.totalorder %s275, %s276
      %p287 = scmp.eq.s32.totalorder %s31, 0
      %p288 = por %p286, %p287
      %p289 = scmp.ne.s32.totalorder %s275, %s276
      %p290 = scmp.eq.s32.totalorder %s32, 1
      %p291 = por %p289, %p290
      %p293 = scmp.ne.s32.totalorder %s276, %s292
      %p294 = scmp.eq.s32.totalorder %s32, 0
      %p295 = por %p293, %p294
      %p296 = scmp.le.s32.totalorder 1, %s26
      %p297 = scmp.lt.s32.totalorder %s26, 3
      %p298 = pnand %p296, %p297
      %p299 = pneg %p298
      // Predicated region
      $region9: #{tpu_custom_call.1} parent=5 // pred_check
        _
      $region10: #{tpu_custom_call.1} parent=5 // pred_check_branch
        %301 = sbr.rel (%p298) target = $region12
      $region11: #{tpu_custom_call.1} parent=5 // pred_region
        %s302 = ssub.s32 %s26, 1
        // Predicated region
        $region13: #{tpu_custom_call.1} parent=11 // pred_check
          %p303 = pneg %p73
        $region14: #{tpu_custom_call.1} parent=11 // pred_check_branch
          %305 = sbr.rel (%p303) target = $region16
        $region15: #{tpu_custom_call.1} parent=11 // pred_region
          %307 = vsyncadd [#allocation6], 0
          %s308 = sshll.u32 %s1, 4
          %s309 = int_to_ptr.hbm [resolvable:$true] %s308
          %s310 = sshll.u32 [#allocation5], 4
          %s311 = int_to_ptr.vmem [resolvable:$true] %s310
          %316 = dma.hbm_to_vmem [thread:$0]  %s309, 2048, %s311, [#allocation6], 128, 128, 8
        $region16: #{tpu_custom_call.1} parent=11 // pred_fallthru
          _
        // Predicated region
        $region17: #{tpu_custom_call.1} parent=11 // pred_check
          %p317 = pneg %p94
        $region18: #{tpu_custom_call.1} parent=11 // pred_check_branch
          %319 = sbr.rel (%p317) target = $region20
        $region19: #{tpu_custom_call.1} parent=11 // pred_region
          %321 = vsyncadd [#allocation6], 0
          %s323 = sshll.u32 %s2, 4
          %s324 = int_to_ptr.hbm [resolvable:$true] %s323
          %s325 = sshll.u32 [#allocation7], 4
          %s326 = int_to_ptr.vmem [resolvable:$true] %s325
          %328 = dma.hbm_to_vmem [thread:$0]  %s324, 32, %s326, [#allocation6]
        $region20: #{tpu_custom_call.1} parent=11 // pred_fallthru
          _
        // Predicated region
        $region21: #{tpu_custom_call.1} parent=11 // pred_check
          %p329 = pneg %p115
        $region22: #{tpu_custom_call.1} parent=11 // pred_check_branch
          %331 = sbr.rel (%p329) target = $region24
        $region23: #{tpu_custom_call.1} parent=11 // pred_region
          %333 = vsyncadd [#allocation9], 0
          %s334 = sshll.u32 %s3, 4
          %s335 = int_to_ptr.hbm [resolvable:$true] %s334
          %s336 = sshll.u32 [#allocation8], 4
          %s337 = int_to_ptr.vmem [resolvable:$true] %s336
          %342 = dma.hbm_to_vmem [thread:$0]  %s335, 4096, %s337, [#allocation9], 128, 128, 8
        $region24: #{tpu_custom_call.1} parent=11 // pred_fallthru
          _
        // Predicated region
        $region25: #{tpu_custom_call.1} parent=11 // pred_check
          %p343 = pneg %p136
        $region26: #{tpu_custom_call.1} parent=11 // pred_check_branch
          %345 = sbr.rel (%p343) target = $region28
        $region27: #{tpu_custom_call.1} parent=11 // pred_region
          _
        $region28: #{tpu_custom_call.1} parent=11 // pred_fallthru
          _
        // Predicated region
        $region29: #{tpu_custom_call.1} parent=11 // pred_check
          %p346 = pneg %p157
        $region30: #{tpu_custom_call.1} parent=11 // pred_check_branch
          %348 = sbr.rel (%p346) target = $region32
        $region31: #{tpu_custom_call.1} parent=11 // pred_region
          %350 = vsyncadd [#allocation9], 0
          %s351 = sshll.u32 %s5, 4
          %s352 = int_to_ptr.hbm [resolvable:$true] %s351
          %s353 = sshll.u32 [#allocation10], 4
          %s354 = int_to_ptr.vmem [resolvable:$true] %s353
          %359 = dma.hbm_to_vmem [thread:$0]  %s352, 4096, %s354, [#allocation9], 128, 128, 8
        $region32: #{tpu_custom_call.1} parent=11 // pred_fallthru
          _
        // Predicated region
        $region33: #{tpu_custom_call.1} parent=11 // pred_check
          %p360 = pneg %p178
        $region34: #{tpu_custom_call.1} parent=11 // pred_check_branch
          %362 = sbr.rel (%p360) target = $region36
        $region35: #{tpu_custom_call.1} parent=11 // pred_region
          _
        $region36: #{tpu_custom_call.1} parent=11 // pred_fallthru
          _
        // Predicated region
        $region37: #{tpu_custom_call.1} parent=11 // pred_check
          %p363 = pneg %p199
        $region38: #{tpu_custom_call.1} parent=11 // pred_check_branch
          %365 = sbr.rel (%p363) target = $region40
        $region39: #{tpu_custom_call.1} parent=11 // pred_region
          %367 = vsyncadd [#allocation12], 0
          %s368 = sshll.u32 %s7, 4
          %s369 = int_to_ptr.hbm [resolvable:$true] %s368
          %s370 = sshll.u32 [#allocation11], 4
          %s371 = int_to_ptr.vmem [resolvable:$true] %s370
          %376 = dma.hbm_to_vmem [thread:$0]  %s369, 4096, %s371, [#allocation12], 128, 128, 8
        $region40: #{tpu_custom_call.1} parent=11 // pred_fallthru
          _
        // Predicated region
        $region41: #{tpu_custom_call.1} parent=11 // pred_check
          %p377 = pneg %p220
        $region42: #{tpu_custom_call.1} parent=11 // pred_check_branch
          %379 = sbr.rel (%p377) target = $region44
        $region43: #{tpu_custom_call.1} parent=11 // pred_region
          _
        $region44: #{tpu_custom_call.1} parent=11 // pred_fallthru
          _
        // Predicated region
        $region45: #{tpu_custom_call.1} parent=11 // pred_check
          %p380 = pneg %p241
        $region46: #{tpu_custom_call.1} parent=11 // pred_check_branch
          %382 = sbr.rel (%p380) target = $region48
        $region47: #{tpu_custom_call.1} parent=11 // pred_region
          %384 = vsyncadd [#allocation12], 0
          %s385 = sshll.u32 %s9, 4
          %s386 = int_to_ptr.hbm [resolvable:$true] %s385
          %s387 = sshll.u32 [#allocation13], 4
          %s388 = int_to_ptr.vmem [resolvable:$true] %s387
          %393 = dma.hbm_to_vmem [thread:$0]  %s386, 2048, %s388, [#allocation12], 64, 64, 4
        $region48: #{tpu_custom_call.1} parent=11 // pred_fallthru
          _
        // Predicated region
        $region49: #{tpu_custom_call.1} parent=11 // pred_check
          %p394 = pneg %p262
        $region50: #{tpu_custom_call.1} parent=11 // pred_check_branch
          %396 = sbr.rel (%p394) target = $region52
        $region51: #{tpu_custom_call.1} parent=11 // pred_region
          _
        $region52: #{tpu_custom_call.1} parent=11 // pred_fallthru
          _
      $region12: #{tpu_custom_call.1} parent=5 // pred_fallthru
        _
      %p397 = scmp.lt.s32.totalorder %s26, 2
      // Predicated region
      $region53: #{tpu_custom_call.1} parent=5 // pred_check
        %p398 = pneg %p397
      $region54: #{tpu_custom_call.1} parent=5 // pred_check_branch
        %400 = sbr.rel (%p398) target = $region56
      $region55: #{tpu_custom_call.1} parent=5 // pred_region
        // Predicated region
        $region57: #{tpu_custom_call.1} parent=55 // pred_check
          %p401 = pneg %p46
        $region58: #{tpu_custom_call.1} parent=55 // pred_check_branch
          %403 = sbr.rel (%p401) target = $region60
        $region59: #{tpu_custom_call.1} parent=55 // pred_region
          %s404 = sand.u32 %s36, 1
          %s405 = scalar_lea.sflag [#allocation3], %s404
          %s406 = sand.u32 %s36, 1
          %s407 = smul.addr %s406, 64
          %s408 = scalar_lea.vmem [#allocation2], %s407
          %s409 = smul.u32 16, %s26
          %411 = vsyncadd %s405, 0
          %s412 = smul.addr %s409, 4
          %s413 = scalar_lea.hbm %s0, %s412
          %s414 = sshll.u32 %s413, 4
          %s415 = int_to_ptr.hbm [resolvable:$true] %s414
          %s416 = sshll.u32 %s408, 4
          %s417 = int_to_ptr.vmem [resolvable:$true] %s416
          %422 = dma.hbm_to_vmem [thread:$0]  %s415, 1024, %s417, %s405, 64, 64, 4
        $region60: #{tpu_custom_call.1} parent=55 // pred_fallthru
          _
      $region56: #{tpu_custom_call.1} parent=5 // pred_fallthru
        _
      %p423 = scmp.le.s32.totalorder 1, %s26
      %p424 = scmp.lt.s32.totalorder %s26, 3
      %p425 = pnand %p423, %p424
      %p426 = pneg %p425
      // Predicated region
      $region61: #{tpu_custom_call.1} parent=5 // pred_check
        _
      $region62: #{tpu_custom_call.1} parent=5 // pred_check_branch
        %428 = sbr.rel (%p425) target = $region64
      $region63: #{tpu_custom_call.1} parent=5 // pred_region
        %s429 = ssub.s32 %s26, 1
        %s430 = sand.u32 %s39, 1
        %s431 = scalar_lea.sflag [#allocation3], %s430
        %s432 = sand.u32 %s39, 1
        %s433 = smul.addr %s432, 64
        %s434 = scalar_lea.vmem [#allocation2], %s433
        // Predicated region
        $region65: #{tpu_custom_call.1} parent=63 // pred_check
          %p435 = pneg %p52
        $region66: #{tpu_custom_call.1} parent=63 // pred_check_branch
          %437 = sbr.rel (%p435) target = $region68
        $region67: #{tpu_custom_call.1} parent=63 // pred_region
          %439 = dma.done %s431, 1024
        $region68: #{tpu_custom_call.1} parent=63 // pred_fallthru
          _
        // Predicated region
        $region69: #{tpu_custom_call.1} parent=63 // pred_check
          %p440 = pneg %p73
        $region70: #{tpu_custom_call.1} parent=63 // pred_check_branch
          %442 = sbr.rel (%p440) target = $region72
        $region71: #{tpu_custom_call.1} parent=63 // pred_region
          %444 = dma.done [#allocation6], 2048
        $region72: #{tpu_custom_call.1} parent=63 // pred_fallthru
          _
        // Predicated region
        $region73: #{tpu_custom_call.1} parent=63 // pred_check
          %p445 = pneg %p94
        $region74: #{tpu_custom_call.1} parent=63 // pred_check_branch
          %447 = sbr.rel (%p445) target = $region76
        $region75: #{tpu_custom_call.1} parent=63 // pred_region
          %449 = dma.done [#allocation6], 32
        $region76: #{tpu_custom_call.1} parent=63 // pred_fallthru
          _
        // Predicated region
        $region77: #{tpu_custom_call.1} parent=63 // pred_check
          %p450 = pneg %p115
        $region78: #{tpu_custom_call.1} parent=63 // pred_check_branch
          %452 = sbr.rel (%p450) target = $region80
        $region79: #{tpu_custom_call.1} parent=63 // pred_region
          %454 = dma.done [#allocation9], 4096
        $region80: #{tpu_custom_call.1} parent=63 // pred_fallthru
          _
        // Predicated region
        $region81: #{tpu_custom_call.1} parent=63 // pred_check
          %p455 = pneg %p157
        $region82: #{tpu_custom_call.1} parent=63 // pred_check_branch
          %457 = sbr.rel (%p455) target = $region84
        $region83: #{tpu_custom_call.1} parent=63 // pred_region
          %459 = dma.done [#allocation9], 4096
        $region84: #{tpu_custom_call.1} parent=63 // pred_fallthru
          _
        // Predicated region
        $region85: #{tpu_custom_call.1} parent=63 // pred_check
          %p460 = pneg %p199
        $region86: #{tpu_custom_call.1} parent=63 // pred_check_branch
          %462 = sbr.rel (%p460) target = $region88
        $region87: #{tpu_custom_call.1} parent=63 // pred_region
          %464 = dma.done [#allocation12], 4096
        $region88: #{tpu_custom_call.1} parent=63 // pred_fallthru
          _
        // Predicated region
        $region89: #{tpu_custom_call.1} parent=63 // pred_check
          %p465 = pneg %p241
        $region90: #{tpu_custom_call.1} parent=63 // pred_check_branch
          %467 = sbr.rel (%p465) target = $region92
        $region91: #{tpu_custom_call.1} parent=63 // pred_region
          %469 = dma.done [#allocation12], 2048
        $region92: #{tpu_custom_call.1} parent=63 // pred_fallthru
          _
        %s470 = sand.u32 %s39, 1
        %s471 = scalar_lea.sflag [#allocation3], %s470
        %s472 = sand.u32 %s39, 1
        %s473 = smul.addr %s472, 64
        %s474 = scalar_lea.vmem [#allocation2], %s473
        %p475 = pneg %p52
        %p476 = pneg %p49
        %p477 = pneg %p73
        %p478 = pneg %p70
        %p479 = pneg %p94
        %p480 = pneg %p91
        %p481 = pneg %p115
        %p482 = pneg %p112
        %p483 = pneg %p136
        %p484 = pneg %p133
        %p485 = pneg %p157
        %p486 = pneg %p154
        %p487 = pneg %p178
        %p488 = pneg %p175
        %p489 = pneg %p199
        %p490 = pneg %p196
        %p491 = pneg %p220
        %p492 = pneg %p217
        %p493 = pneg %p241
        %p494 = pneg %p238
        %p495 = pneg %p262
        %p496 = pneg %p259
        %p497 = pneg %p288
        %p498 = pneg %p285
        %s499 = sand.u32 %s275, 1
        %s500 = scalar_lea.sflag [#allocation4], %s499
        %s501 = sand.u32 %s275, 1
        %s502 = smul.addr %s501, 128
        %s503 = scalar_lea.vmem [#allocation14], %s502
        %s504 = smul.u32 16, %s31
        %s505 = smul.u32 16, %s31
        %v506 = vld [vmem:[%s434] sm:$0xf]
        %v507 = vld [vmem:[%s434 + $0x4] sm:$0xf]
        %v508 = vld [vmem:[%s434 + $0x8] sm:$0xf]
        %v509 = vld [vmem:[%s434 + $0xc] sm:$0xf]
        %v510 = vld [vmem:[%s434 + $0x10] sm:$0xf]
        %v511 = vld [vmem:[%s434 + $0x14] sm:$0xf]
        %v512 = vld [vmem:[%s434 + $0x18] sm:$0xf]
        %v513 = vld [vmem:[%s434 + $0x1c] sm:$0xf]
        %v514 = vld [vmem:[%s434 + $0x20] sm:$0xf]
        %v515 = vld [vmem:[%s434 + $0x24] sm:$0xf]
        %v516 = vld [vmem:[%s434 + $0x28] sm:$0xf]
        %v517 = vld [vmem:[%s434 + $0x2c] sm:$0xf]
        %v518 = vld [vmem:[%s434 + $0x30] sm:$0xf]
        %v519 = vld [vmem:[%s434 + $0x34] sm:$0xf]
        %v520 = vld [vmem:[%s434 + $0x38] sm:$0xf]
        %v521 = vld [vmem:[%s434 + $0x3c] sm:$0xf]
        %v522 = vld [vmem:[#allocation5] sm:$0xff]
        %v523 = vld [vmem:[#allocation5 + $0x8] sm:$0xff]
        %v524 = vld [vmem:[#allocation5 + $0x10] sm:$0xff]
        %v525 = vld [vmem:[#allocation5 + $0x18] sm:$0xff]
        %v526 = vld [vmem:[#allocation5 + $0x20] sm:$0xff]
        %v527 = vld [vmem:[#allocation5 + $0x28] sm:$0xff]
        %v528 = vld [vmem:[#allocation5 + $0x30] sm:$0xff]
        %v529 = vld [vmem:[#allocation5 + $0x38] sm:$0xff]
        %v530 = vld [vmem:[#allocation5 + $0x40] sm:$0xff]
        %v531 = vld [vmem:[#allocation5 + $0x48] sm:$0xff]
        %v532 = vld [vmem:[#allocation5 + $0x50] sm:$0xff]
        %v533 = vld [vmem:[#allocation5 + $0x58] sm:$0xff]
        %v534 = vld [vmem:[#allocation5 + $0x60] sm:$0xff]
        %v535 = vld [vmem:[#allocation5 + $0x68] sm:$0xff]
        %v536 = vld [vmem:[#allocation5 + $0x70] sm:$0xff]
        %v537 = vld [vmem:[#allocation5 + $0x78] sm:$0xff]
        %v538 = vld [vmem:[#allocation7] sm:$0x3]
        %v540 = vperm.slane %v538, 0
        %v541 = vperm.slane %v538, 1
        %v560 = vunpack.c.l.b16 %v506
        %v561 = vunpack.c.l.b16 %v507
        %v562 = vunpack.c.l.b16 %v508
        %v563 = vunpack.c.l.b16 %v509
        %v564 = vunpack.c.l.b16 %v510
        %v565 = vunpack.c.l.b16 %v511
        %v566 = vunpack.c.l.b16 %v512
        %v567 = vunpack.c.l.b16 %v513
        %v568 = vunpack.c.l.b16 %v514
        %v569 = vunpack.c.l.b16 %v515
        %v570 = vunpack.c.l.b16 %v516
        %v571 = vunpack.c.l.b16 %v517
        %v572 = vunpack.c.l.b16 %v518
        %v573 = vunpack.c.l.b16 %v519
        %v574 = vunpack.c.l.b16 %v520
        %v575 = vunpack.c.l.b16 %v521
        %v576 = vpack.c.b16 %v561, %v560
        %v577 = vpack.c.b16 %v563, %v562
        %v578 = vpack.c.b16 %v565, %v564
        %v579 = vpack.c.b16 %v567, %v566
        %v580 = vpack.c.b16 %v569, %v568
        %v581 = vpack.c.b16 %v571, %v570
        %v582 = vpack.c.b16 %v573, %v572
        %v583 = vpack.c.b16 %v575, %v574
        %v608 = vunpack.c.l.b16 %v522
        %v609 = vunpack.c.h.b16 %v522
        %v610 = vunpack.c.l.b16 %v523
        %v611 = vunpack.c.h.b16 %v523
        %v612 = vunpack.c.l.b16 %v524
        %v613 = vunpack.c.h.b16 %v524
        %v614 = vunpack.c.l.b16 %v525
        %v615 = vunpack.c.h.b16 %v525
        %v616 = vunpack.c.l.b16 %v526
        %v617 = vunpack.c.h.b16 %v526
        %v618 = vunpack.c.l.b16 %v527
        %v619 = vunpack.c.h.b16 %v527
        %v620 = vunpack.c.l.b16 %v528
        %v621 = vunpack.c.h.b16 %v528
        %v622 = vunpack.c.l.b16 %v529
        %v623 = vunpack.c.h.b16 %v529
        %v624 = vunpack.c.l.b16 %v530
        %v625 = vunpack.c.h.b16 %v530
        %v626 = vunpack.c.l.b16 %v531
        %v627 = vunpack.c.h.b16 %v531
        %v628 = vunpack.c.l.b16 %v532
        %v629 = vunpack.c.h.b16 %v532
        %v630 = vunpack.c.l.b16 %v533
        %v631 = vunpack.c.h.b16 %v533
        %v632 = vunpack.c.l.b16 %v534
        %v633 = vunpack.c.h.b16 %v534
        %v634 = vunpack.c.l.b16 %v535
        %v635 = vunpack.c.h.b16 %v535
        %v636 = vunpack.c.l.b16 %v536
        %v637 = vunpack.c.h.b16 %v536
        %v638 = vunpack.c.l.b16 %v537
        %v639 = vunpack.c.h.b16 %v537
        %v640 = vpack.c.b16 %v610, %v608
        %v641 = vpack.c.b16 %v611, %v609
        %v642 = vpack.c.b16 %v614, %v612
        %v643 = vpack.c.b16 %v615, %v613
        %v644 = vpack.c.b16 %v618, %v616
        %v645 = vpack.c.b16 %v619, %v617
        %v646 = vpack.c.b16 %v622, %v620
        %v647 = vpack.c.b16 %v623, %v621
        %v648 = vpack.c.b16 %v626, %v624
        %v649 = vpack.c.b16 %v627, %v625
        %v650 = vpack.c.b16 %v630, %v628
        %v651 = vpack.c.b16 %v631, %v629
        %v652 = vpack.c.b16 %v634, %v632
        %v653 = vpack.c.b16 %v635, %v633
        %v654 = vpack.c.b16 %v638, %v636
        %v655 = vpack.c.b16 %v639, %v637
        %672 = vmatpush.bf16.msra.mxu0 %v654
        %673 = vmatpush.bf16.msra.mxu0 %v652
        %674 = vmatpush.bf16.msra.mxu0 %v650
        %675 = vmatpush.bf16.msra.mxu0 %v648
        %676 = vmatpush.bf16.msra.mxu0 %v646
        %677 = vmatpush.bf16.msra.mxu0 %v644
        %678 = vmatpush.bf16.msra.mxu0 %v642
        %679 = vmatpush.bf16.msra.mxu0 %v640
        %680 = vmatmul.bf16.gmra.mxu0 %v576
        %v681 = vpop.f32.mrf.mxu0
        %v682 = vadd.f32 %v540, %v681
        %v683 = vpop.f32.mrf.mxu0
        %v684 = vadd.f32 %v540, %v683
        %685 = vmatmul.bf16.gmra.mxu0 %v577
        %v686 = vpop.f32.mrf.mxu0
        %v687 = vadd.f32 %v540, %v686
        %v688 = vpop.f32.mrf.mxu0
        %v689 = vadd.f32 %v540, %v688
        %690 = vmatmul.bf16.gmra.mxu0 %v578
        %v691 = vpop.f32.mrf.mxu0
        %v692 = vadd.f32 %v540, %v691
        %v693 = vpop.f32.mrf.mxu0
        %v694 = vadd.f32 %v540, %v693
        %695 = vmatmul.bf16.gmra.mxu0 %v579
        %v696 = vpop.f32.mrf.mxu0
        %v697 = vadd.f32 %v540, %v696
        %v698 = vpop.f32.mrf.mxu0
        %v699 = vadd.f32 %v540, %v698
        %700 = vmatmul.bf16.gmra.mxu0 %v580
        %v701 = vpop.f32.mrf.mxu0
        %v702 = vadd.f32 %v540, %v701
        %v703 = vpop.f32.mrf.mxu0
        %v704 = vadd.f32 %v540, %v703
        %705 = vmatmul.bf16.gmra.mxu0 %v581
        %v706 = vpop.f32.mrf.mxu0
        %v707 = vadd.f32 %v540, %v706
        %v708 = vpop.f32.mrf.mxu0
        %v709 = vadd.f32 %v540, %v708
        %710 = vmatmul.bf16.gmra.mxu0 %v582
        %v711 = vpop.f32.mrf.mxu0
        %v712 = vadd.f32 %v540, %v711
        %v713 = vpop.f32.mrf.mxu0
        %v714 = vadd.f32 %v540, %v713
        %715 = vmatmul.bf16.gmra.mxu0 %v583
        %v716 = vpop.f32.mrf.mxu0
        %v717 = vadd.f32 %v540, %v716
        %v718 = vpop.f32.mrf.mxu0
        %v719 = vadd.f32 %v540, %v718
        %720 = vdwg.mxu0
        %721 = vmatpush.bf16.msra.mxu0 %v655
        %722 = vmatpush.bf16.msra.mxu0 %v653
        %723 = vmatpush.bf16.msra.mxu0 %v651
        %724 = vmatpush.bf16.msra.mxu0 %v649
        %725 = vmatpush.bf16.msra.mxu0 %v647
        %726 = vmatpush.bf16.msra.mxu0 %v645
        %727 = vmatpush.bf16.msra.mxu0 %v643
        %728 = vmatpush.bf16.msra.mxu0 %v641
        %729 = vmatmul.bf16.gmra.mxu0 %v576
        %v730 = vpop.f32.mrf.mxu0
        %v731 = vadd.f32 %v541, %v730
        %v732 = vpop.f32.mrf.mxu0
        %v733 = vadd.f32 %v541, %v732
        %734 = vmatmul.bf16.gmra.mxu0 %v577
        %v735 = vpop.f32.mrf.mxu0
        %v736 = vadd.f32 %v541, %v735
        %v737 = vpop.f32.mrf.mxu0
        %v738 = vadd.f32 %v541, %v737
        %739 = vmatmul.bf16.gmra.mxu0 %v578
        %v740 = vpop.f32.mrf.mxu0
        %v741 = vadd.f32 %v541, %v740
        %v742 = vpop.f32.mrf.mxu0
        %v743 = vadd.f32 %v541, %v742
        %744 = vmatmul.bf16.gmra.mxu0 %v579
        %v745 = vpop.f32.mrf.mxu0
        %v746 = vadd.f32 %v541, %v745
        %v747 = vpop.f32.mrf.mxu0
        %v748 = vadd.f32 %v541, %v747
        %749 = vmatmul.bf16.gmra.mxu0 %v580
        %v750 = vpop.f32.mrf.mxu0
        %v751 = vadd.f32 %v541, %v750
        %v752 = vpop.f32.mrf.mxu0
        %v753 = vadd.f32 %v541, %v752
        %754 = vmatmul.bf16.gmra.mxu0 %v581
        %v755 = vpop.f32.mrf.mxu0
        %v756 = vadd.f32 %v541, %v755
        %v757 = vpop.f32.mrf.mxu0
        %v758 = vadd.f32 %v541, %v757
        %759 = vmatmul.bf16.gmra.mxu0 %v582
        %v760 = vpop.f32.mrf.mxu0
        %v761 = vadd.f32 %v541, %v760
        %v762 = vpop.f32.mrf.mxu0
        %v763 = vadd.f32 %v541, %v762
        %764 = vmatmul.bf16.gmra.mxu0 %v583
        %v765 = vpop.f32.mrf.mxu0
        %v766 = vadd.f32 %v541, %v765
        %v767 = vpop.f32.mrf.mxu0
        %v768 = vadd.f32 %v541, %v767
        %769 = vdwg.mxu0
        %v770 = vmax.f32 %v682, 0.0
        %v771 = vmax.f32 %v731, 0.0
        %v772 = vmax.f32 %v684, 0.0
        %v773 = vmax.f32 %v733, 0.0
        %v774 = vmax.f32 %v687, 0.0
        %v775 = vmax.f32 %v736, 0.0
        %v776 = vmax.f32 %v689, 0.0
        %v777 = vmax.f32 %v738, 0.0
        %v778 = vmax.f32 %v692, 0.0
        %v779 = vmax.f32 %v741, 0.0
        %v780 = vmax.f32 %v694, 0.0
        %v781 = vmax.f32 %v743, 0.0
        %v782 = vmax.f32 %v697, 0.0
        %v783 = vmax.f32 %v746, 0.0
        %v784 = vmax.f32 %v699, 0.0
        %v785 = vmax.f32 %v748, 0.0
        %v786 = vmax.f32 %v702, 0.0
        %v787 = vmax.f32 %v751, 0.0
        %v788 = vmax.f32 %v704, 0.0
        %v789 = vmax.f32 %v753, 0.0
        %v790 = vmax.f32 %v707, 0.0
        %v791 = vmax.f32 %v756, 0.0
        %v792 = vmax.f32 %v709, 0.0
        %v793 = vmax.f32 %v758, 0.0
        %v794 = vmax.f32 %v712, 0.0
        %v795 = vmax.f32 %v761, 0.0
        %v796 = vmax.f32 %v714, 0.0
        %v797 = vmax.f32 %v763, 0.0
        %v798 = vmax.f32 %v717, 0.0
        %v799 = vmax.f32 %v766, 0.0
        %v800 = vmax.f32 %v719, 0.0
        %v801 = vmax.f32 %v768, 0.0
        %v802 = vpack.c.bf16 %v772, %v770
        %v803 = vpack.c.bf16 %v773, %v771
        %v804 = vpack.c.bf16 %v776, %v774
        %v805 = vpack.c.bf16 %v777, %v775
        %v806 = vpack.c.bf16 %v780, %v778
        %v807 = vpack.c.bf16 %v781, %v779
        %v808 = vpack.c.bf16 %v784, %v782
        %v809 = vpack.c.bf16 %v785, %v783
        %v810 = vpack.c.bf16 %v788, %v786
        %v811 = vpack.c.bf16 %v789, %v787
        %v812 = vpack.c.bf16 %v792, %v790
        %v813 = vpack.c.bf16 %v793, %v791
        %v814 = vpack.c.bf16 %v796, %v794
        %v815 = vpack.c.bf16 %v797, %v795
        %v816 = vpack.c.bf16 %v800, %v798
        %v817 = vpack.c.bf16 %v801, %v799
        %v818 = vld [vmem:[#allocation8] sm:$0xff]
        %v819 = vld [vmem:[#allocation8 + $0x8] sm:$0xff]
        %v820 = vld [vmem:[#allocation8 + $0x10] sm:$0xff]
        %v821 = vld [vmem:[#allocation8 + $0x18] sm:$0xff]
        %v822 = vld [vmem:[#allocation8 + $0x20] sm:$0xff]
        %v823 = vld [vmem:[#allocation8 + $0x28] sm:$0xff]
        %v824 = vld [vmem:[#allocation8 + $0x30] sm:$0xff]
        %v825 = vld [vmem:[#allocation8 + $0x38] sm:$0xff]
        %v826 = vld [vmem:[#allocation8 + $0x40] sm:$0xff]
        %v827 = vld [vmem:[#allocation8 + $0x48] sm:$0xff]
        %v828 = vld [vmem:[#allocation8 + $0x50] sm:$0xff]
        %v829 = vld [vmem:[#allocation8 + $0x58] sm:$0xff]
        %v830 = vld [vmem:[#allocation8 + $0x60] sm:$0xff]
        %v831 = vld [vmem:[#allocation8 + $0x68] sm:$0xff]
        %v832 = vld [vmem:[#allocation8 + $0x70] sm:$0xff]
        %v833 = vld [vmem:[#allocation8 + $0x78] sm:$0xff]
        %v834 = vld [vmem:[#allocation8 + $0x80] sm:$0xff]
        %v835 = vld [vmem:[#allocation8 + $0x88] sm:$0xff]
        %v836 = vld [vmem:[#allocation8 + $0x90] sm:$0xff]
        %v837 = vld [vmem:[#allocation8 + $0x98] sm:$0xff]
        %v838 = vld [vmem:[#allocation8 + $0xa0] sm:$0xff]
        %v839 = vld [vmem:[#allocation8 + $0xa8] sm:$0xff]
        %v840 = vld [vmem:[#allocation8 + $0xb0] sm:$0xff]
        %v841 = vld [vmem:[#allocation8 + $0xb8] sm:$0xff]
        %v842 = vld [vmem:[#allocation8 + $0xc0] sm:$0xff]
        %v843 = vld [vmem:[#allocation8 + $0xc8] sm:$0xff]
        %v844 = vld [vmem:[#allocation8 + $0xd0] sm:$0xff]
        %v845 = vld [vmem:[#allocation8 + $0xd8] sm:$0xff]
        %v846 = vld [vmem:[#allocation8 + $0xe0] sm:$0xff]
        %v847 = vld [vmem:[#allocation8 + $0xe8] sm:$0xff]
        %v848 = vld [vmem:[#allocation8 + $0xf0] sm:$0xff]
        %v849 = vld [vmem:[#allocation8 + $0xf8] sm:$0xff]
        %v850 = vld [vmem:[%s4] sm:$0x3]
        %v852 = vperm.slane %v850, 0
        %v853 = vperm.slane %v850, 1
        %v888 = vunpack.c.l.b16 %v818
        %v889 = vunpack.c.h.b16 %v818
        %v890 = vunpack.c.l.b16 %v819
        %v891 = vunpack.c.h.b16 %v819
        %v892 = vunpack.c.l.b16 %v820
        %v893 = vunpack.c.h.b16 %v820
        %v894 = vunpack.c.l.b16 %v821
        %v895 = vunpack.c.h.b16 %v821
        %v896 = vunpack.c.l.b16 %v822
        %v897 = vunpack.c.h.b16 %v822
        %v898 = vunpack.c.l.b16 %v823
        %v899 = vunpack.c.h.b16 %v823
        %v900 = vunpack.c.l.b16 %v824
        %v901 = vunpack.c.h.b16 %v824
        %v902 = vunpack.c.l.b16 %v825
        %v903 = vunpack.c.h.b16 %v825
        %v904 = vunpack.c.l.b16 %v826
        %v905 = vunpack.c.h.b16 %v826
        %v906 = vunpack.c.l.b16 %v827
        %v907 = vunpack.c.h.b16 %v827
        %v908 = vunpack.c.l.b16 %v828
        %v909 = vunpack.c.h.b16 %v828
        %v910 = vunpack.c.l.b16 %v829
        %v911 = vunpack.c.h.b16 %v829
        %v912 = vunpack.c.l.b16 %v830
        %v913 = vunpack.c.h.b16 %v830
        %v914 = vunpack.c.l.b16 %v831
        %v915 = vunpack.c.h.b16 %v831
        %v916 = vunpack.c.l.b16 %v832
        %v917 = vunpack.c.h.b16 %v832
        %v918 = vunpack.c.l.b16 %v833
        %v919 = vunpack.c.h.b16 %v833
        %v920 = vunpack.c.l.b16 %v834
        %v921 = vunpack.c.h.b16 %v834
        %v922 = vunpack.c.l.b16 %v835
        %v923 = vunpack.c.h.b16 %v835
        %v924 = vunpack.c.l.b16 %v836
        %v925 = vunpack.c.h.b16 %v836
        %v926 = vunpack.c.l.b16 %v837
        %v927 = vunpack.c.h.b16 %v837
        %v928 = vunpack.c.l.b16 %v838
        %v929 = vunpack.c.h.b16 %v838
        %v930 = vunpack.c.l.b16 %v839
        %v931 = vunpack.c.h.b16 %v839
        %v932 = vunpack.c.l.b16 %v840
        %v933 = vunpack.c.h.b16 %v840
        %v934 = vunpack.c.l.b16 %v841
        %v935 = vunpack.c.h.b16 %v841
        %v936 = vunpack.c.l.b16 %v842
        %v937 = vunpack.c.h.b16 %v842
        %v938 = vunpack.c.l.b16 %v843
        %v939 = vunpack.c.h.b16 %v843
        %v940 = vunpack.c.l.b16 %v844
        %v941 = vunpack.c.h.b16 %v844
        %v942 = vunpack.c.l.b16 %v845
        %v943 = vunpack.c.h.b16 %v845
        %v944 = vunpack.c.l.b16 %v846
        %v945 = vunpack.c.h.b16 %v846
        %v946 = vunpack.c.l.b16 %v847
        %v947 = vunpack.c.h.b16 %v847
        %v948 = vunpack.c.l.b16 %v848
        %v949 = vunpack.c.h.b16 %v848
        %v950 = vunpack.c.l.b16 %v849
        %v951 = vunpack.c.h.b16 %v849
        %v952 = vpack.c.b16 %v890, %v888
        %v953 = vpack.c.b16 %v891, %v889
        %v954 = vpack.c.b16 %v894, %v892
        %v955 = vpack.c.b16 %v895, %v893
        %v956 = vpack.c.b16 %v898, %v896
        %v957 = vpack.c.b16 %v899, %v897
        %v958 = vpack.c.b16 %v902, %v900
        %v959 = vpack.c.b16 %v903, %v901
        %v960 = vpack.c.b16 %v906, %v904
        %v961 = vpack.c.b16 %v907, %v905
        %v962 = vpack.c.b16 %v910, %v908
        %v963 = vpack.c.b16 %v911, %v909
        %v964 = vpack.c.b16 %v914, %v912
        %v965 = vpack.c.b16 %v915, %v913
        %v966 = vpack.c.b16 %v918, %v916
        %v967 = vpack.c.b16 %v919, %v917
        %v968 = vpack.c.b16 %v922, %v920
        %v969 = vpack.c.b16 %v923, %v921
        %v970 = vpack.c.b16 %v926, %v924
        %v971 = vpack.c.b16 %v927, %v925
        %v972 = vpack.c.b16 %v930, %v928
        %v973 = vpack.c.b16 %v931, %v929
        %v974 = vpack.c.b16 %v934, %v932
        %v975 = vpack.c.b16 %v935, %v933
        %v976 = vpack.c.b16 %v938, %v936
        %v977 = vpack.c.b16 %v939, %v937
        %v978 = vpack.c.b16 %v942, %v940
        %v979 = vpack.c.b16 %v943, %v941
        %v980 = vpack.c.b16 %v946, %v944
        %v981 = vpack.c.b16 %v947, %v945
        %v982 = vpack.c.b16 %v950, %v948
        %v983 = vpack.c.b16 %v951, %v949
        %1016 = vmatpush.bf16.msra.mxu0 %v966
        %1017 = vmatpush.bf16.msra.mxu0 %v964
        %1018 = vmatpush.bf16.msra.mxu0 %v962
        %1019 = vmatpush.bf16.msra.mxu0 %v960
        %1020 = vmatpush.bf16.msra.mxu0 %v958
        %1021 = vmatpush.bf16.msra.mxu0 %v956
        %1022 = vmatpush.bf16.msra.mxu0 %v954
        %1023 = vmatpush.bf16.msra.mxu0 %v952
        %1024 = vmatmul.bf16.gmra.mxu0 %v802
        %v1025 = vpop.f32.mrf.mxu0
        %v1026 = vadd.f32 %v852, %v1025
        %v1027 = vpop.f32.mrf.mxu0
        %v1028 = vadd.f32 %v852, %v1027
        %1029 = vmatmul.bf16.gmra.mxu0 %v804
        %v1030 = vpop.f32.mrf.mxu0
        %v1031 = vadd.f32 %v852, %v1030
        %v1032 = vpop.f32.mrf.mxu0
        %v1033 = vadd.f32 %v852, %v1032
        %1034 = vmatmul.bf16.gmra.mxu0 %v806
        %v1035 = vpop.f32.mrf.mxu0
        %v1036 = vadd.f32 %v852, %v1035
        %v1037 = vpop.f32.mrf.mxu0
        %v1038 = vadd.f32 %v852, %v1037
        %1039 = vmatmul.bf16.gmra.mxu0 %v808
        %v1040 = vpop.f32.mrf.mxu0
        %v1041 = vadd.f32 %v852, %v1040
        %v1042 = vpop.f32.mrf.mxu0
        %v1043 = vadd.f32 %v852, %v1042
        %1044 = vmatmul.bf16.gmra.mxu0 %v810
        %v1045 = vpop.f32.mrf.mxu0
        %v1046 = vadd.f32 %v852, %v1045
        %v1047 = vpop.f32.mrf.mxu0
        %v1048 = vadd.f32 %v852, %v1047
        %1049 = vmatmul.bf16.gmra.mxu0 %v812
        %v1050 = vpop.f32.mrf.mxu0
        %v1051 = vadd.f32 %v852, %v1050
        %v1052 = vpop.f32.mrf.mxu0
        %v1053 = vadd.f32 %v852, %v1052
        %1054 = vmatmul.bf16.gmra.mxu0 %v814
        %v1055 = vpop.f32.mrf.mxu0
        %v1056 = vadd.f32 %v852, %v1055
        %v1057 = vpop.f32.mrf.mxu0
        %v1058 = vadd.f32 %v852, %v1057
        %1059 = vmatmul.bf16.gmra.mxu0 %v816
        %v1060 = vpop.f32.mrf.mxu0
        %v1061 = vadd.f32 %v852, %v1060
        %v1062 = vpop.f32.mrf.mxu0
        %v1063 = vadd.f32 %v852, %v1062
        %1064 = vdwg.mxu0
        %1065 = vmatpush.bf16.msra.mxu0 %v982
        %1066 = vmatpush.bf16.msra.mxu0 %v980
        %1067 = vmatpush.bf16.msra.mxu0 %v978
        %1068 = vmatpush.bf16.msra.mxu0 %v976
        %1069 = vmatpush.bf16.msra.mxu0 %v974
        %1070 = vmatpush.bf16.msra.mxu0 %v972
        %1071 = vmatpush.bf16.msra.mxu0 %v970
        %1072 = vmatpush.bf16.msra.mxu0 %v968
        %1073 = vmatmul.bf16.gmra.mxu0 %v803
        %v1074 = vpop.f32.mrf.mxu0
        %v1075 = vadd.f32 %v1026, %v1074
        %v1076 = vpop.f32.mrf.mxu0
        %v1077 = vadd.f32 %v1028, %v1076
        %1078 = vmatmul.bf16.gmra.mxu0 %v805
        %v1079 = vpop.f32.mrf.mxu0
        %v1080 = vadd.f32 %v1031, %v1079
        %v1081 = vpop.f32.mrf.mxu0
        %v1082 = vadd.f32 %v1033, %v1081
        %1083 = vmatmul.bf16.gmra.mxu0 %v807
        %v1084 = vpop.f32.mrf.mxu0
        %v1085 = vadd.f32 %v1036, %v1084
        %v1086 = vpop.f32.mrf.mxu0
        %v1087 = vadd.f32 %v1038, %v1086
        %1088 = vmatmul.bf16.gmra.mxu0 %v809
        %v1089 = vpop.f32.mrf.mxu0
        %v1090 = vadd.f32 %v1041, %v1089
        %v1091 = vpop.f32.mrf.mxu0
        %v1092 = vadd.f32 %v1043, %v1091
        %1093 = vmatmul.bf16.gmra.mxu0 %v811
        %v1094 = vpop.f32.mrf.mxu0
        %v1095 = vadd.f32 %v1046, %v1094
        %v1096 = vpop.f32.mrf.mxu0
        %v1097 = vadd.f32 %v1048, %v1096
        %1098 = vmatmul.bf16.gmra.mxu0 %v813
        %v1099 = vpop.f32.mrf.mxu0
        %v1100 = vadd.f32 %v1051, %v1099
        %v1101 = vpop.f32.mrf.mxu0
        %v1102 = vadd.f32 %v1053, %v1101
        %1103 = vmatmul.bf16.gmra.mxu0 %v815
        %v1104 = vpop.f32.mrf.mxu0
        %v1105 = vadd.f32 %v1056, %v1104
        %v1106 = vpop.f32.mrf.mxu0
        %v1107 = vadd.f32 %v1058, %v1106
        %1108 = vmatmul.bf16.gmra.mxu0 %v817
        %v1109 = vpop.f32.mrf.mxu0
        %v1110 = vadd.f32 %v1061, %v1109
        %v1111 = vpop.f32.mrf.mxu0
        %v1112 = vadd.f32 %v1063, %v1111
        %1113 = vdwg.mxu0
        %1114 = vmatpush.bf16.msra.mxu0 %v967
        %1115 = vmatpush.bf16.msra.mxu0 %v965
        %1116 = vmatpush.bf16.msra.mxu0 %v963
        %1117 = vmatpush.bf16.msra.mxu0 %v961
        %1118 = vmatpush.bf16.msra.mxu0 %v959
        %1119 = vmatpush.bf16.msra.mxu0 %v957
        %1120 = vmatpush.bf16.msra.mxu0 %v955
        %1121 = vmatpush.bf16.msra.mxu0 %v953
        %1122 = vmatmul.bf16.gmra.mxu0 %v802
        %v1123 = vpop.f32.mrf.mxu0
        %v1124 = vadd.f32 %v853, %v1123
        %v1125 = vpop.f32.mrf.mxu0
        %v1126 = vadd.f32 %v853, %v1125
        %1127 = vmatmul.bf16.gmra.mxu0 %v804
        %v1128 = vpop.f32.mrf.mxu0
        %v1129 = vadd.f32 %v853, %v1128
        %v1130 = vpop.f32.mrf.mxu0
        %v1131 = vadd.f32 %v853, %v1130
        %1132 = vmatmul.bf16.gmra.mxu0 %v806
        %v1133 = vpop.f32.mrf.mxu0
        %v1134 = vadd.f32 %v853, %v1133
        %v1135 = vpop.f32.mrf.mxu0
        %v1136 = vadd.f32 %v853, %v1135
        %1137 = vmatmul.bf16.gmra.mxu0 %v808
        %v1138 = vpop.f32.mrf.mxu0
        %v1139 = vadd.f32 %v853, %v1138
        %v1140 = vpop.f32.mrf.mxu0
        %v1141 = vadd.f32 %v853, %v1140
        %1142 = vmatmul.bf16.gmra.mxu0 %v810
        %v1143 = vpop.f32.mrf.mxu0
        %v1144 = vadd.f32 %v853, %v1143
        %v1145 = vpop.f32.mrf.mxu0
        %v1146 = vadd.f32 %v853, %v1145
        %1147 = vmatmul.bf16.gmra.mxu0 %v812
        %v1148 = vpop.f32.mrf.mxu0
        %v1149 = vadd.f32 %v853, %v1148
        %v1150 = vpop.f32.mrf.mxu0
        %v1151 = vadd.f32 %v853, %v1150
        %1152 = vmatmul.bf16.gmra.mxu0 %v814
        %v1153 = vpop.f32.mrf.mxu0
        %v1154 = vadd.f32 %v853, %v1153
        %v1155 = vpop.f32.mrf.mxu0
        %v1156 = vadd.f32 %v853, %v1155
        %1157 = vmatmul.bf16.gmra.mxu0 %v816
        %v1158 = vpop.f32.mrf.mxu0
        %v1159 = vadd.f32 %v853, %v1158
        %v1160 = vpop.f32.mrf.mxu0
        %v1161 = vadd.f32 %v853, %v1160
        %1162 = vdwg.mxu0
        %1163 = vmatpush.bf16.msra.mxu0 %v983
        %1164 = vmatpush.bf16.msra.mxu0 %v981
        %1165 = vmatpush.bf16.msra.mxu0 %v979
        %1166 = vmatpush.bf16.msra.mxu0 %v977
        %1167 = vmatpush.bf16.msra.mxu0 %v975
        %1168 = vmatpush.bf16.msra.mxu0 %v973
        %1169 = vmatpush.bf16.msra.mxu0 %v971
        %1170 = vmatpush.bf16.msra.mxu0 %v969
        %1171 = vmatmul.bf16.gmra.mxu0 %v803
        %v1172 = vpop.f32.mrf.mxu0
        %v1173 = vadd.f32 %v1124, %v1172
        %v1174 = vpop.f32.mrf.mxu0
        %v1175 = vadd.f32 %v1126, %v1174
        %1176 = vmatmul.bf16.gmra.mxu0 %v805
        %v1177 = vpop.f32.mrf.mxu0
        %v1178 = vadd.f32 %v1129, %v1177
        %v1179 = vpop.f32.mrf.mxu0
        %v1180 = vadd.f32 %v1131, %v1179
        %1181 = vmatmul.bf16.gmra.mxu0 %v807
        %v1182 = vpop.f32.mrf.mxu0
        %v1183 = vadd.f32 %v1134, %v1182
        %v1184 = vpop.f32.mrf.mxu0
        %v1185 = vadd.f32 %v1136, %v1184
        %1186 = vmatmul.bf16.gmra.mxu0 %v809
        %v1187 = vpop.f32.mrf.mxu0
        %v1188 = vadd.f32 %v1139, %v1187
        %v1189 = vpop.f32.mrf.mxu0
        %v1190 = vadd.f32 %v1141, %v1189
        %1191 = vmatmul.bf16.gmra.mxu0 %v811
        %v1192 = vpop.f32.mrf.mxu0
        %v1193 = vadd.f32 %v1144, %v1192
        %v1194 = vpop.f32.mrf.mxu0
        %v1195 = vadd.f32 %v1146, %v1194
        %1196 = vmatmul.bf16.gmra.mxu0 %v813
        %v1197 = vpop.f32.mrf.mxu0
        %v1198 = vadd.f32 %v1149, %v1197
        %v1199 = vpop.f32.mrf.mxu0
        %v1200 = vadd.f32 %v1151, %v1199
        %1201 = vmatmul.bf16.gmra.mxu0 %v815
        %v1202 = vpop.f32.mrf.mxu0
        %v1203 = vadd.f32 %v1154, %v1202
        %v1204 = vpop.f32.mrf.mxu0
        %v1205 = vadd.f32 %v1156, %v1204
        %1206 = vmatmul.bf16.gmra.mxu0 %v817
        %v1207 = vpop.f32.mrf.mxu0
        %v1208 = vadd.f32 %v1159, %v1207
        %v1209 = vpop.f32.mrf.mxu0
        %v1210 = vadd.f32 %v1161, %v1209
        %1211 = vdwg.mxu0
        %v1212 = vmax.f32 %v1075, 0.0
        %v1213 = vmax.f32 %v1173, 0.0
        %v1214 = vmax.f32 %v1077, 0.0
        %v1215 = vmax.f32 %v1175, 0.0
        %v1216 = vmax.f32 %v1080, 0.0
        %v1217 = vmax.f32 %v1178, 0.0
        %v1218 = vmax.f32 %v1082, 0.0
        %v1219 = vmax.f32 %v1180, 0.0
        %v1220 = vmax.f32 %v1085, 0.0
        %v1221 = vmax.f32 %v1183, 0.0
        %v1222 = vmax.f32 %v1087, 0.0
        %v1223 = vmax.f32 %v1185, 0.0
        %v1224 = vmax.f32 %v1090, 0.0
        %v1225 = vmax.f32 %v1188, 0.0
        %v1226 = vmax.f32 %v1092, 0.0
        %v1227 = vmax.f32 %v1190, 0.0
        %v1228 = vmax.f32 %v1095, 0.0
        %v1229 = vmax.f32 %v1193, 0.0
        %v1230 = vmax.f32 %v1097, 0.0
        %v1231 = vmax.f32 %v1195, 0.0
        %v1232 = vmax.f32 %v1100, 0.0
        %v1233 = vmax.f32 %v1198, 0.0
        %v1234 = vmax.f32 %v1102, 0.0
        %v1235 = vmax.f32 %v1200, 0.0
        %v1236 = vmax.f32 %v1105, 0.0
        %v1237 = vmax.f32 %v1203, 0.0
        %v1238 = vmax.f32 %v1107, 0.0
        %v1239 = vmax.f32 %v1205, 0.0
        %v1240 = vmax.f32 %v1110, 0.0
        %v1241 = vmax.f32 %v1208, 0.0
        %v1242 = vmax.f32 %v1112, 0.0
        %v1243 = vmax.f32 %v1210, 0.0
        %v1244 = vpack.c.bf16 %v1214, %v1212
        %v1245 = vpack.c.bf16 %v1215, %v1213
        %v1246 = vpack.c.bf16 %v1218, %v1216
        %v1247 = vpack.c.bf16 %v1219, %v1217
        %v1248 = vpack.c.bf16 %v1222, %v1220
        %v1249 = vpack.c.bf16 %v1223, %v1221
        %v1250 = vpack.c.bf16 %v1226, %v1224
        %v1251 = vpack.c.bf16 %v1227, %v1225
        %v1252 = vpack.c.bf16 %v1230, %v1228
        %v1253 = vpack.c.bf16 %v1231, %v1229
        %v1254 = vpack.c.bf16 %v1234, %v1232
        %v1255 = vpack.c.bf16 %v1235, %v1233
        %v1256 = vpack.c.bf16 %v1238, %v1236
        %v1257 = vpack.c.bf16 %v1239, %v1237
        %v1258 = vpack.c.bf16 %v1242, %v1240
        %v1259 = vpack.c.bf16 %v1243, %v1241
        %v1260 = vld [vmem:[#allocation10] sm:$0xff]
        %v1261 = vld [vmem:[#allocation10 + $0x8] sm:$0xff]
        %v1262 = vld [vmem:[#allocation10 + $0x10] sm:$0xff]
        %v1263 = vld [vmem:[#allocation10 + $0x18] sm:$0xff]
        %v1264 = vld [vmem:[#allocation10 + $0x20] sm:$0xff]
        %v1265 = vld [vmem:[#allocation10 + $0x28] sm:$0xff]
        %v1266 = vld [vmem:[#allocation10 + $0x30] sm:$0xff]
        %v1267 = vld [vmem:[#allocation10 + $0x38] sm:$0xff]
        %v1268 = vld [vmem:[#allocation10 + $0x40] sm:$0xff]
        %v1269 = vld [vmem:[#allocation10 + $0x48] sm:$0xff]
        %v1270 = vld [vmem:[#allocation10 + $0x50] sm:$0xff]
        %v1271 = vld [vmem:[#allocation10 + $0x58] sm:$0xff]
        %v1272 = vld [vmem:[#allocation10 + $0x60] sm:$0xff]
        %v1273 = vld [vmem:[#allocation10 + $0x68] sm:$0xff]
        %v1274 = vld [vmem:[#allocation10 + $0x70] sm:$0xff]
        %v1275 = vld [vmem:[#allocation10 + $0x78] sm:$0xff]
        %v1276 = vld [vmem:[#allocation10 + $0x80] sm:$0xff]
        %v1277 = vld [vmem:[#allocation10 + $0x88] sm:$0xff]
        %v1278 = vld [vmem:[#allocation10 + $0x90] sm:$0xff]
        %v1279 = vld [vmem:[#allocation10 + $0x98] sm:$0xff]
        %v1280 = vld [vmem:[#allocation10 + $0xa0] sm:$0xff]
        %v1281 = vld [vmem:[#allocation10 + $0xa8] sm:$0xff]
        %v1282 = vld [vmem:[#allocation10 + $0xb0] sm:$0xff]
        %v1283 = vld [vmem:[#allocation10 + $0xb8] sm:$0xff]
        %v1284 = vld [vmem:[#allocation10 + $0xc0] sm:$0xff]
        %v1285 = vld [vmem:[#allocation10 + $0xc8] sm:$0xff]
        %v1286 = vld [vmem:[#allocation10 + $0xd0] sm:$0xff]
        %v1287 = vld [vmem:[#allocation10 + $0xd8] sm:$0xff]
        %v1288 = vld [vmem:[#allocation10 + $0xe0] sm:$0xff]
        %v1289 = vld [vmem:[#allocation10 + $0xe8] sm:$0xff]
        %v1290 = vld [vmem:[#allocation10 + $0xf0] sm:$0xff]
        %v1291 = vld [vmem:[#allocation10 + $0xf8] sm:$0xff]
        %v1292 = vld [vmem:[%s6] sm:$0x3]
        %v1294 = vperm.slane %v1292, 0
        %v1295 = vperm.slane %v1292, 1
        %v1330 = vunpack.c.l.b16 %v1260
        %v1331 = vunpack.c.h.b16 %v1260
        %v1332 = vunpack.c.l.b16 %v1261
        %v1333 = vunpack.c.h.b16 %v1261
        %v1334 = vunpack.c.l.b16 %v1262
        %v1335 = vunpack.c.h.b16 %v1262
        %v1336 = vunpack.c.l.b16 %v1263
        %v1337 = vunpack.c.h.b16 %v1263
        %v1338 = vunpack.c.l.b16 %v1264
        %v1339 = vunpack.c.h.b16 %v1264
        %v1340 = vunpack.c.l.b16 %v1265
        %v1341 = vunpack.c.h.b16 %v1265
        %v1342 = vunpack.c.l.b16 %v1266
        %v1343 = vunpack.c.h.b16 %v1266
        %v1344 = vunpack.c.l.b16 %v1267
        %v1345 = vunpack.c.h.b16 %v1267
        %v1346 = vunpack.c.l.b16 %v1268
        %v1347 = vunpack.c.h.b16 %v1268
        %v1348 = vunpack.c.l.b16 %v1269
        %v1349 = vunpack.c.h.b16 %v1269
        %v1350 = vunpack.c.l.b16 %v1270
        %v1351 = vunpack.c.h.b16 %v1270
        %v1352 = vunpack.c.l.b16 %v1271
        %v1353 = vunpack.c.h.b16 %v1271
        %v1354 = vunpack.c.l.b16 %v1272
        %v1355 = vunpack.c.h.b16 %v1272
        %v1356 = vunpack.c.l.b16 %v1273
        %v1357 = vunpack.c.h.b16 %v1273
        %v1358 = vunpack.c.l.b16 %v1274
        %v1359 = vunpack.c.h.b16 %v1274
        %v1360 = vunpack.c.l.b16 %v1275
        %v1361 = vunpack.c.h.b16 %v1275
        %v1362 = vunpack.c.l.b16 %v1276
        %v1363 = vunpack.c.h.b16 %v1276
        %v1364 = vunpack.c.l.b16 %v1277
        %v1365 = vunpack.c.h.b16 %v1277
        %v1366 = vunpack.c.l.b16 %v1278
        %v1367 = vunpack.c.h.b16 %v1278
        %v1368 = vunpack.c.l.b16 %v1279
        %v1369 = vunpack.c.h.b16 %v1279
        %v1370 = vunpack.c.l.b16 %v1280
        %v1371 = vunpack.c.h.b16 %v1280
        %v1372 = vunpack.c.l.b16 %v1281
        %v1373 = vunpack.c.h.b16 %v1281
        %v1374 = vunpack.c.l.b16 %v1282
        %v1375 = vunpack.c.h.b16 %v1282
        %v1376 = vunpack.c.l.b16 %v1283
        %v1377 = vunpack.c.h.b16 %v1283
        %v1378 = vunpack.c.l.b16 %v1284
        %v1379 = vunpack.c.h.b16 %v1284
        %v1380 = vunpack.c.l.b16 %v1285
        %v1381 = vunpack.c.h.b16 %v1285
        %v1382 = vunpack.c.l.b16 %v1286
        %v1383 = vunpack.c.h.b16 %v1286
        %v1384 = vunpack.c.l.b16 %v1287
        %v1385 = vunpack.c.h.b16 %v1287
        %v1386 = vunpack.c.l.b16 %v1288
        %v1387 = vunpack.c.h.b16 %v1288
        %v1388 = vunpack.c.l.b16 %v1289
        %v1389 = vunpack.c.h.b16 %v1289
        %v1390 = vunpack.c.l.b16 %v1290
        %v1391 = vunpack.c.h.b16 %v1290
        %v1392 = vunpack.c.l.b16 %v1291
        %v1393 = vunpack.c.h.b16 %v1291
        %v1394 = vpack.c.b16 %v1332, %v1330
        %v1395 = vpack.c.b16 %v1333, %v1331
        %v1396 = vpack.c.b16 %v1336, %v1334
        %v1397 = vpack.c.b16 %v1337, %v1335
        %v1398 = vpack.c.b16 %v1340, %v1338
        %v1399 = vpack.c.b16 %v1341, %v1339
        %v1400 = vpack.c.b16 %v1344, %v1342
        %v1401 = vpack.c.b16 %v1345, %v1343
        %v1402 = vpack.c.b16 %v1348, %v1346
        %v1403 = vpack.c.b16 %v1349, %v1347
        %v1404 = vpack.c.b16 %v1352, %v1350
        %v1405 = vpack.c.b16 %v1353, %v1351
        %v1406 = vpack.c.b16 %v1356, %v1354
        %v1407 = vpack.c.b16 %v1357, %v1355
        %v1408 = vpack.c.b16 %v1360, %v1358
        %v1409 = vpack.c.b16 %v1361, %v1359
        %v1410 = vpack.c.b16 %v1364, %v1362
        %v1411 = vpack.c.b16 %v1365, %v1363
        %v1412 = vpack.c.b16 %v1368, %v1366
        %v1413 = vpack.c.b16 %v1369, %v1367
        %v1414 = vpack.c.b16 %v1372, %v1370
        %v1415 = vpack.c.b16 %v1373, %v1371
        %v1416 = vpack.c.b16 %v1376, %v1374
        %v1417 = vpack.c.b16 %v1377, %v1375
        %v1418 = vpack.c.b16 %v1380, %v1378
        %v1419 = vpack.c.b16 %v1381, %v1379
        %v1420 = vpack.c.b16 %v1384, %v1382
        %v1421 = vpack.c.b16 %v1385, %v1383
        %v1422 = vpack.c.b16 %v1388, %v1386
        %v1423 = vpack.c.b16 %v1389, %v1387
        %v1424 = vpack.c.b16 %v1392, %v1390
        %v1425 = vpack.c.b16 %v1393, %v1391
        %1458 = vmatpush.bf16.msra.mxu0 %v1408
        %1459 = vmatpush.bf16.msra.mxu0 %v1406
        %1460 = vmatpush.bf16.msra.mxu0 %v1404
        %1461 = vmatpush.bf16.msra.mxu0 %v1402
        %1462 = vmatpush.bf16.msra.mxu0 %v1400
        %1463 = vmatpush.bf16.msra.mxu0 %v1398
        %1464 = vmatpush.bf16.msra.mxu0 %v1396
        %1465 = vmatpush.bf16.msra.mxu0 %v1394
        %1466 = vmatmul.bf16.gmra.mxu0 %v1244
        %v1467 = vpop.f32.mrf.mxu0
        %v1468 = vadd.f32 %v1294, %v1467
        %v1469 = vpop.f32.mrf.mxu0
        %v1470 = vadd.f32 %v1294, %v1469
        %1471 = vmatmul.bf16.gmra.mxu0 %v1246
        %v1472 = vpop.f32.mrf.mxu0
        %v1473 = vadd.f32 %v1294, %v1472
        %v1474 = vpop.f32.mrf.mxu0
        %v1475 = vadd.f32 %v1294, %v1474
        %1476 = vmatmul.bf16.gmra.mxu0 %v1248
        %v1477 = vpop.f32.mrf.mxu0
        %v1478 = vadd.f32 %v1294, %v1477
        %v1479 = vpop.f32.mrf.mxu0
        %v1480 = vadd.f32 %v1294, %v1479
        %1481 = vmatmul.bf16.gmra.mxu0 %v1250
        %v1482 = vpop.f32.mrf.mxu0
        %v1483 = vadd.f32 %v1294, %v1482
        %v1484 = vpop.f32.mrf.mxu0
        %v1485 = vadd.f32 %v1294, %v1484
        %1486 = vmatmul.bf16.gmra.mxu0 %v1252
        %v1487 = vpop.f32.mrf.mxu0
        %v1488 = vadd.f32 %v1294, %v1487
        %v1489 = vpop.f32.mrf.mxu0
        %v1490 = vadd.f32 %v1294, %v1489
        %1491 = vmatmul.bf16.gmra.mxu0 %v1254
        %v1492 = vpop.f32.mrf.mxu0
        %v1493 = vadd.f32 %v1294, %v1492
        %v1494 = vpop.f32.mrf.mxu0
        %v1495 = vadd.f32 %v1294, %v1494
        %1496 = vmatmul.bf16.gmra.mxu0 %v1256
        %v1497 = vpop.f32.mrf.mxu0
        %v1498 = vadd.f32 %v1294, %v1497
        %v1499 = vpop.f32.mrf.mxu0
        %v1500 = vadd.f32 %v1294, %v1499
        %1501 = vmatmul.bf16.gmra.mxu0 %v1258
        %v1502 = vpop.f32.mrf.mxu0
        %v1503 = vadd.f32 %v1294, %v1502
        %v1504 = vpop.f32.mrf.mxu0
        %v1505 = vadd.f32 %v1294, %v1504
        %1506 = vdwg.mxu0
        %1507 = vmatpush.bf16.msra.mxu0 %v1424
        %1508 = vmatpush.bf16.msra.mxu0 %v1422
        %1509 = vmatpush.bf16.msra.mxu0 %v1420
        %1510 = vmatpush.bf16.msra.mxu0 %v1418
        %1511 = vmatpush.bf16.msra.mxu0 %v1416
        %1512 = vmatpush.bf16.msra.mxu0 %v1414
        %1513 = vmatpush.bf16.msra.mxu0 %v1412
        %1514 = vmatpush.bf16.msra.mxu0 %v1410
        %1515 = vmatmul.bf16.gmra.mxu0 %v1245
        %v1516 = vpop.f32.mrf.mxu0
        %v1517 = vadd.f32 %v1468, %v1516
        %v1518 = vpop.f32.mrf.mxu0
        %v1519 = vadd.f32 %v1470, %v1518
        %1520 = vmatmul.bf16.gmra.mxu0 %v1247
        %v1521 = vpop.f32.mrf.mxu0
        %v1522 = vadd.f32 %v1473, %v1521
        %v1523 = vpop.f32.mrf.mxu0
        %v1524 = vadd.f32 %v1475, %v1523
        %1525 = vmatmul.bf16.gmra.mxu0 %v1249
        %v1526 = vpop.f32.mrf.mxu0
        %v1527 = vadd.f32 %v1478, %v1526
        %v1528 = vpop.f32.mrf.mxu0
        %v1529 = vadd.f32 %v1480, %v1528
        %1530 = vmatmul.bf16.gmra.mxu0 %v1251
        %v1531 = vpop.f32.mrf.mxu0
        %v1532 = vadd.f32 %v1483, %v1531
        %v1533 = vpop.f32.mrf.mxu0
        %v1534 = vadd.f32 %v1485, %v1533
        %1535 = vmatmul.bf16.gmra.mxu0 %v1253
        %v1536 = vpop.f32.mrf.mxu0
        %v1537 = vadd.f32 %v1488, %v1536
        %v1538 = vpop.f32.mrf.mxu0
        %v1539 = vadd.f32 %v1490, %v1538
        %1540 = vmatmul.bf16.gmra.mxu0 %v1255
        %v1541 = vpop.f32.mrf.mxu0
        %v1542 = vadd.f32 %v1493, %v1541
        %v1543 = vpop.f32.mrf.mxu0
        %v1544 = vadd.f32 %v1495, %v1543
        %1545 = vmatmul.bf16.gmra.mxu0 %v1257
        %v1546 = vpop.f32.mrf.mxu0
        %v1547 = vadd.f32 %v1498, %v1546
        %v1548 = vpop.f32.mrf.mxu0
        %v1549 = vadd.f32 %v1500, %v1548
        %1550 = vmatmul.bf16.gmra.mxu0 %v1259
        %v1551 = vpop.f32.mrf.mxu0
        %v1552 = vadd.f32 %v1503, %v1551
        %v1553 = vpop.f32.mrf.mxu0
        %v1554 = vadd.f32 %v1505, %v1553
        %1555 = vdwg.mxu0
        %1556 = vmatpush.bf16.msra.mxu0 %v1409
        %1557 = vmatpush.bf16.msra.mxu0 %v1407
        %1558 = vmatpush.bf16.msra.mxu0 %v1405
        %1559 = vmatpush.bf16.msra.mxu0 %v1403
        %1560 = vmatpush.bf16.msra.mxu0 %v1401
        %1561 = vmatpush.bf16.msra.mxu0 %v1399
        %1562 = vmatpush.bf16.msra.mxu0 %v1397
        %1563 = vmatpush.bf16.msra.mxu0 %v1395
        %1564 = vmatmul.bf16.gmra.mxu0 %v1244
        %v1565 = vpop.f32.mrf.mxu0
        %v1566 = vadd.f32 %v1295, %v1565
        %v1567 = vpop.f32.mrf.mxu0
        %v1568 = vadd.f32 %v1295, %v1567
        %1569 = vmatmul.bf16.gmra.mxu0 %v1246
        %v1570 = vpop.f32.mrf.mxu0
        %v1571 = vadd.f32 %v1295, %v1570
        %v1572 = vpop.f32.mrf.mxu0
        %v1573 = vadd.f32 %v1295, %v1572
        %1574 = vmatmul.bf16.gmra.mxu0 %v1248
        %v1575 = vpop.f32.mrf.mxu0
        %v1576 = vadd.f32 %v1295, %v1575
        %v1577 = vpop.f32.mrf.mxu0
        %v1578 = vadd.f32 %v1295, %v1577
        %1579 = vmatmul.bf16.gmra.mxu0 %v1250
        %v1580 = vpop.f32.mrf.mxu0
        %v1581 = vadd.f32 %v1295, %v1580
        %v1582 = vpop.f32.mrf.mxu0
        %v1583 = vadd.f32 %v1295, %v1582
        %1584 = vmatmul.bf16.gmra.mxu0 %v1252
        %v1585 = vpop.f32.mrf.mxu0
        %v1586 = vadd.f32 %v1295, %v1585
        %v1587 = vpop.f32.mrf.mxu0
        %v1588 = vadd.f32 %v1295, %v1587
        %1589 = vmatmul.bf16.gmra.mxu0 %v1254
        %v1590 = vpop.f32.mrf.mxu0
        %v1591 = vadd.f32 %v1295, %v1590
        %v1592 = vpop.f32.mrf.mxu0
        %v1593 = vadd.f32 %v1295, %v1592
        %1594 = vmatmul.bf16.gmra.mxu0 %v1256
        %v1595 = vpop.f32.mrf.mxu0
        %v1596 = vadd.f32 %v1295, %v1595
        %v1597 = vpop.f32.mrf.mxu0
        %v1598 = vadd.f32 %v1295, %v1597
        %1599 = vmatmul.bf16.gmra.mxu0 %v1258
        %v1600 = vpop.f32.mrf.mxu0
        %v1601 = vadd.f32 %v1295, %v1600
        %v1602 = vpop.f32.mrf.mxu0
        %v1603 = vadd.f32 %v1295, %v1602
        %1604 = vdwg.mxu0
        %1605 = vmatpush.bf16.msra.mxu0 %v1425
        %1606 = vmatpush.bf16.msra.mxu0 %v1423
        %1607 = vmatpush.bf16.msra.mxu0 %v1421
        %1608 = vmatpush.bf16.msra.mxu0 %v1419
        %1609 = vmatpush.bf16.msra.mxu0 %v1417
        %1610 = vmatpush.bf16.msra.mxu0 %v1415
        %1611 = vmatpush.bf16.msra.mxu0 %v1413
        %1612 = vmatpush.bf16.msra.mxu0 %v1411
        %1613 = vmatmul.bf16.gmra.mxu0 %v1245
        %v1614 = vpop.f32.mrf.mxu0
        %v1615 = vadd.f32 %v1566, %v1614
        %v1616 = vpop.f32.mrf.mxu0
        %v1617 = vadd.f32 %v1568, %v1616
        %1618 = vmatmul.bf16.gmra.mxu0 %v1247
        %v1619 = vpop.f32.mrf.mxu0
        %v1620 = vadd.f32 %v1571, %v1619
        %v1621 = vpop.f32.mrf.mxu0
        %v1622 = vadd.f32 %v1573, %v1621
        %1623 = vmatmul.bf16.gmra.mxu0 %v1249
        %v1624 = vpop.f32.mrf.mxu0
        %v1625 = vadd.f32 %v1576, %v1624
        %v1626 = vpop.f32.mrf.mxu0
        %v1627 = vadd.f32 %v1578, %v1626
        %1628 = vmatmul.bf16.gmra.mxu0 %v1251
        %v1629 = vpop.f32.mrf.mxu0
        %v1630 = vadd.f32 %v1581, %v1629
        %v1631 = vpop.f32.mrf.mxu0
        %v1632 = vadd.f32 %v1583, %v1631
        %1633 = vmatmul.bf16.gmra.mxu0 %v1253
        %v1634 = vpop.f32.mrf.mxu0
        %v1635 = vadd.f32 %v1586, %v1634
        %v1636 = vpop.f32.mrf.mxu0
        %v1637 = vadd.f32 %v1588, %v1636
        %1638 = vmatmul.bf16.gmra.mxu0 %v1255
        %v1639 = vpop.f32.mrf.mxu0
        %v1640 = vadd.f32 %v1591, %v1639
        %v1641 = vpop.f32.mrf.mxu0
        %v1642 = vadd.f32 %v1593, %v1641
        %1643 = vmatmul.bf16.gmra.mxu0 %v1257
        %v1644 = vpop.f32.mrf.mxu0
        %v1645 = vadd.f32 %v1596, %v1644
        %v1646 = vpop.f32.mrf.mxu0
        %v1647 = vadd.f32 %v1598, %v1646
        %1648 = vmatmul.bf16.gmra.mxu0 %v1259
        %v1649 = vpop.f32.mrf.mxu0
        %v1650 = vadd.f32 %v1601, %v1649
        %v1651 = vpop.f32.mrf.mxu0
        %v1652 = vadd.f32 %v1603, %v1651
        %1653 = vdwg.mxu0
        %v1654 = vmax.f32 %v1517, 0.0
        %v1655 = vmax.f32 %v1615, 0.0
        %v1656 = vmax.f32 %v1519, 0.0
        %v1657 = vmax.f32 %v1617, 0.0
        %v1658 = vmax.f32 %v1522, 0.0
        %v1659 = vmax.f32 %v1620, 0.0
        %v1660 = vmax.f32 %v1524, 0.0
        %v1661 = vmax.f32 %v1622, 0.0
        %v1662 = vmax.f32 %v1527, 0.0
        %v1663 = vmax.f32 %v1625, 0.0
        %v1664 = vmax.f32 %v1529, 0.0
        %v1665 = vmax.f32 %v1627, 0.0
        %v1666 = vmax.f32 %v1532, 0.0
        %v1667 = vmax.f32 %v1630, 0.0
        %v1668 = vmax.f32 %v1534, 0.0
        %v1669 = vmax.f32 %v1632, 0.0
        %v1670 = vmax.f32 %v1537, 0.0
        %v1671 = vmax.f32 %v1635, 0.0
        %v1672 = vmax.f32 %v1539, 0.0
        %v1673 = vmax.f32 %v1637, 0.0
        %v1674 = vmax.f32 %v1542, 0.0
        %v1675 = vmax.f32 %v1640, 0.0
        %v1676 = vmax.f32 %v1544, 0.0
        %v1677 = vmax.f32 %v1642, 0.0
        %v1678 = vmax.f32 %v1547, 0.0
        %v1679 = vmax.f32 %v1645, 0.0
        %v1680 = vmax.f32 %v1549, 0.0
        %v1681 = vmax.f32 %v1647, 0.0
        %v1682 = vmax.f32 %v1552, 0.0
        %v1683 = vmax.f32 %v1650, 0.0
        %v1684 = vmax.f32 %v1554, 0.0
        %v1685 = vmax.f32 %v1652, 0.0
        %v1686 = vpack.c.bf16 %v1656, %v1654
        %v1687 = vpack.c.bf16 %v1657, %v1655
        %v1688 = vpack.c.bf16 %v1660, %v1658
        %v1689 = vpack.c.bf16 %v1661, %v1659
        %v1690 = vpack.c.bf16 %v1664, %v1662
        %v1691 = vpack.c.bf16 %v1665, %v1663
        %v1692 = vpack.c.bf16 %v1668, %v1666
        %v1693 = vpack.c.bf16 %v1669, %v1667
        %v1694 = vpack.c.bf16 %v1672, %v1670
        %v1695 = vpack.c.bf16 %v1673, %v1671
        %v1696 = vpack.c.bf16 %v1676, %v1674
        %v1697 = vpack.c.bf16 %v1677, %v1675
        %v1698 = vpack.c.bf16 %v1680, %v1678
        %v1699 = vpack.c.bf16 %v1681, %v1679
        %v1700 = vpack.c.bf16 %v1684, %v1682
        %v1701 = vpack.c.bf16 %v1685, %v1683
        %v1702 = vld [vmem:[#allocation11] sm:$0xff]
        %v1703 = vld [vmem:[#allocation11 + $0x8] sm:$0xff]
        %v1704 = vld [vmem:[#allocation11 + $0x10] sm:$0xff]
        %v1705 = vld [vmem:[#allocation11 + $0x18] sm:$0xff]
        %v1706 = vld [vmem:[#allocation11 + $0x20] sm:$0xff]
        %v1707 = vld [vmem:[#allocation11 + $0x28] sm:$0xff]
        %v1708 = vld [vmem:[#allocation11 + $0x30] sm:$0xff]
        %v1709 = vld [vmem:[#allocation11 + $0x38] sm:$0xff]
        %v1710 = vld [vmem:[#allocation11 + $0x40] sm:$0xff]
        %v1711 = vld [vmem:[#allocation11 + $0x48] sm:$0xff]
        %v1712 = vld [vmem:[#allocation11 + $0x50] sm:$0xff]
        %v1713 = vld [vmem:[#allocation11 + $0x58] sm:$0xff]
        %v1714 = vld [vmem:[#allocation11 + $0x60] sm:$0xff]
        %v1715 = vld [vmem:[#allocation11 + $0x68] sm:$0xff]
        %v1716 = vld [vmem:[#allocation11 + $0x70] sm:$0xff]
        %v1717 = vld [vmem:[#allocation11 + $0x78] sm:$0xff]
        %v1718 = vld [vmem:[#allocation11 + $0x80] sm:$0xff]
        %v1719 = vld [vmem:[#allocation11 + $0x88] sm:$0xff]
        %v1720 = vld [vmem:[#allocation11 + $0x90] sm:$0xff]
        %v1721 = vld [vmem:[#allocation11 + $0x98] sm:$0xff]
        %v1722 = vld [vmem:[#allocation11 + $0xa0] sm:$0xff]
        %v1723 = vld [vmem:[#allocation11 + $0xa8] sm:$0xff]
        %v1724 = vld [vmem:[#allocation11 + $0xb0] sm:$0xff]
        %v1725 = vld [vmem:[#allocation11 + $0xb8] sm:$0xff]
        %v1726 = vld [vmem:[#allocation11 + $0xc0] sm:$0xff]
        %v1727 = vld [vmem:[#allocation11 + $0xc8] sm:$0xff]
        %v1728 = vld [vmem:[#allocation11 + $0xd0] sm:$0xff]
        %v1729 = vld [vmem:[#allocation11 + $0xd8] sm:$0xff]
        %v1730 = vld [vmem:[#allocation11 + $0xe0] sm:$0xff]
        %v1731 = vld [vmem:[#allocation11 + $0xe8] sm:$0xff]
        %v1732 = vld [vmem:[#allocation11 + $0xf0] sm:$0xff]
        %v1733 = vld [vmem:[#allocation11 + $0xf8] sm:$0xff]
        %v1734 = vld [vmem:[%s8] sm:$0x3]
        %v1736 = vperm.slane %v1734, 0
        %v1737 = vperm.slane %v1734, 1
        %v1772 = vunpack.c.l.b16 %v1702
        %v1773 = vunpack.c.h.b16 %v1702
        %v1774 = vunpack.c.l.b16 %v1703
        %v1775 = vunpack.c.h.b16 %v1703
        %v1776 = vunpack.c.l.b16 %v1704
        %v1777 = vunpack.c.h.b16 %v1704
        %v1778 = vunpack.c.l.b16 %v1705
        %v1779 = vunpack.c.h.b16 %v1705
        %v1780 = vunpack.c.l.b16 %v1706
        %v1781 = vunpack.c.h.b16 %v1706
        %v1782 = vunpack.c.l.b16 %v1707
        %v1783 = vunpack.c.h.b16 %v1707
        %v1784 = vunpack.c.l.b16 %v1708
        %v1785 = vunpack.c.h.b16 %v1708
        %v1786 = vunpack.c.l.b16 %v1709
        %v1787 = vunpack.c.h.b16 %v1709
        %v1788 = vunpack.c.l.b16 %v1710
        %v1789 = vunpack.c.h.b16 %v1710
        %v1790 = vunpack.c.l.b16 %v1711
        %v1791 = vunpack.c.h.b16 %v1711
        %v1792 = vunpack.c.l.b16 %v1712
        %v1793 = vunpack.c.h.b16 %v1712
        %v1794 = vunpack.c.l.b16 %v1713
        %v1795 = vunpack.c.h.b16 %v1713
        %v1796 = vunpack.c.l.b16 %v1714
        %v1797 = vunpack.c.h.b16 %v1714
        %v1798 = vunpack.c.l.b16 %v1715
        %v1799 = vunpack.c.h.b16 %v1715
        %v1800 = vunpack.c.l.b16 %v1716
        %v1801 = vunpack.c.h.b16 %v1716
        %v1802 = vunpack.c.l.b16 %v1717
        %v1803 = vunpack.c.h.b16 %v1717
        %v1804 = vunpack.c.l.b16 %v1718
        %v1805 = vunpack.c.h.b16 %v1718
        %v1806 = vunpack.c.l.b16 %v1719
        %v1807 = vunpack.c.h.b16 %v1719
        %v1808 = vunpack.c.l.b16 %v1720
        %v1809 = vunpack.c.h.b16 %v1720
        %v1810 = vunpack.c.l.b16 %v1721
        %v1811 = vunpack.c.h.b16 %v1721
        %v1812 = vunpack.c.l.b16 %v1722
        %v1813 = vunpack.c.h.b16 %v1722
        %v1814 = vunpack.c.l.b16 %v1723
        %v1815 = vunpack.c.h.b16 %v1723
        %v1816 = vunpack.c.l.b16 %v1724
        %v1817 = vunpack.c.h.b16 %v1724
        %v1818 = vunpack.c.l.b16 %v1725
        %v1819 = vunpack.c.h.b16 %v1725
        %v1820 = vunpack.c.l.b16 %v1726
        %v1821 = vunpack.c.h.b16 %v1726
        %v1822 = vunpack.c.l.b16 %v1727
        %v1823 = vunpack.c.h.b16 %v1727
        %v1824 = vunpack.c.l.b16 %v1728
        %v1825 = vunpack.c.h.b16 %v1728
        %v1826 = vunpack.c.l.b16 %v1729
        %v1827 = vunpack.c.h.b16 %v1729
        %v1828 = vunpack.c.l.b16 %v1730
        %v1829 = vunpack.c.h.b16 %v1730
        %v1830 = vunpack.c.l.b16 %v1731
        %v1831 = vunpack.c.h.b16 %v1731
        %v1832 = vunpack.c.l.b16 %v1732
        %v1833 = vunpack.c.h.b16 %v1732
        %v1834 = vunpack.c.l.b16 %v1733
        %v1835 = vunpack.c.h.b16 %v1733
        %v1836 = vpack.c.b16 %v1774, %v1772
        %v1837 = vpack.c.b16 %v1775, %v1773
        %v1838 = vpack.c.b16 %v1778, %v1776
        %v1839 = vpack.c.b16 %v1779, %v1777
        %v1840 = vpack.c.b16 %v1782, %v1780
        %v1841 = vpack.c.b16 %v1783, %v1781
        %v1842 = vpack.c.b16 %v1786, %v1784
        %v1843 = vpack.c.b16 %v1787, %v1785
        %v1844 = vpack.c.b16 %v1790, %v1788
        %v1845 = vpack.c.b16 %v1791, %v1789
        %v1846 = vpack.c.b16 %v1794, %v1792
        %v1847 = vpack.c.b16 %v1795, %v1793
        %v1848 = vpack.c.b16 %v1798, %v1796
        %v1849 = vpack.c.b16 %v1799, %v1797
        %v1850 = vpack.c.b16 %v1802, %v1800
        %v1851 = vpack.c.b16 %v1803, %v1801
        %v1852 = vpack.c.b16 %v1806, %v1804
        %v1853 = vpack.c.b16 %v1807, %v1805
        %v1854 = vpack.c.b16 %v1810, %v1808
        %v1855 = vpack.c.b16 %v1811, %v1809
        %v1856 = vpack.c.b16 %v1814, %v1812
        %v1857 = vpack.c.b16 %v1815, %v1813
        %v1858 = vpack.c.b16 %v1818, %v1816
        %v1859 = vpack.c.b16 %v1819, %v1817
        %v1860 = vpack.c.b16 %v1822, %v1820
        %v1861 = vpack.c.b16 %v1823, %v1821
        %v1862 = vpack.c.b16 %v1826, %v1824
        %v1863 = vpack.c.b16 %v1827, %v1825
        %v1864 = vpack.c.b16 %v1830, %v1828
        %v1865 = vpack.c.b16 %v1831, %v1829
        %v1866 = vpack.c.b16 %v1834, %v1832
        %v1867 = vpack.c.b16 %v1835, %v1833
        %1900 = vmatpush.bf16.msra.mxu0 %v1850
        %1901 = vmatpush.bf16.msra.mxu0 %v1848
        %1902 = vmatpush.bf16.msra.mxu0 %v1846
        %1903 = vmatpush.bf16.msra.mxu0 %v1844
        %1904 = vmatpush.bf16.msra.mxu0 %v1842
        %1905 = vmatpush.bf16.msra.mxu0 %v1840
        %1906 = vmatpush.bf16.msra.mxu0 %v1838
        %1907 = vmatpush.bf16.msra.mxu0 %v1836
        %1908 = vmatmul.bf16.gmra.mxu0 %v1686
        %v1909 = vpop.f32.mrf.mxu0
        %v1910 = vadd.f32 %v1736, %v1909
        %v1911 = vpop.f32.mrf.mxu0
        %v1912 = vadd.f32 %v1736, %v1911
        %1913 = vmatmul.bf16.gmra.mxu0 %v1688
        %v1914 = vpop.f32.mrf.mxu0
        %v1915 = vadd.f32 %v1736, %v1914
        %v1916 = vpop.f32.mrf.mxu0
        %v1917 = vadd.f32 %v1736, %v1916
        %1918 = vmatmul.bf16.gmra.mxu0 %v1690
        %v1919 = vpop.f32.mrf.mxu0
        %v1920 = vadd.f32 %v1736, %v1919
        %v1921 = vpop.f32.mrf.mxu0
        %v1922 = vadd.f32 %v1736, %v1921
        %1923 = vmatmul.bf16.gmra.mxu0 %v1692
        %v1924 = vpop.f32.mrf.mxu0
        %v1925 = vadd.f32 %v1736, %v1924
        %v1926 = vpop.f32.mrf.mxu0
        %v1927 = vadd.f32 %v1736, %v1926
        %1928 = vmatmul.bf16.gmra.mxu0 %v1694
        %v1929 = vpop.f32.mrf.mxu0
        %v1930 = vadd.f32 %v1736, %v1929
        %v1931 = vpop.f32.mrf.mxu0
        %v1932 = vadd.f32 %v1736, %v1931
        %1933 = vmatmul.bf16.gmra.mxu0 %v1696
        %v1934 = vpop.f32.mrf.mxu0
        %v1935 = vadd.f32 %v1736, %v1934
        %v1936 = vpop.f32.mrf.mxu0
        %v1937 = vadd.f32 %v1736, %v1936
        %1938 = vmatmul.bf16.gmra.mxu0 %v1698
        %v1939 = vpop.f32.mrf.mxu0
        %v1940 = vadd.f32 %v1736, %v1939
        %v1941 = vpop.f32.mrf.mxu0
        %v1942 = vadd.f32 %v1736, %v1941
        %1943 = vmatmul.bf16.gmra.mxu0 %v1700
        %v1944 = vpop.f32.mrf.mxu0
        %v1945 = vadd.f32 %v1736, %v1944
        %v1946 = vpop.f32.mrf.mxu0
        %v1947 = vadd.f32 %v1736, %v1946
        %1948 = vdwg.mxu0
        %1949 = vmatpush.bf16.msra.mxu0 %v1866
        %1950 = vmatpush.bf16.msra.mxu0 %v1864
        %1951 = vmatpush.bf16.msra.mxu0 %v1862
        %1952 = vmatpush.bf16.msra.mxu0 %v1860
        %1953 = vmatpush.bf16.msra.mxu0 %v1858
        %1954 = vmatpush.bf16.msra.mxu0 %v1856
        %1955 = vmatpush.bf16.msra.mxu0 %v1854
        %1956 = vmatpush.bf16.msra.mxu0 %v1852
        %1957 = vmatmul.bf16.gmra.mxu0 %v1687
        %v1958 = vpop.f32.mrf.mxu0
        %v1959 = vadd.f32 %v1910, %v1958
        %v1960 = vpop.f32.mrf.mxu0
        %v1961 = vadd.f32 %v1912, %v1960
        %1962 = vmatmul.bf16.gmra.mxu0 %v1689
        %v1963 = vpop.f32.mrf.mxu0
        %v1964 = vadd.f32 %v1915, %v1963
        %v1965 = vpop.f32.mrf.mxu0
        %v1966 = vadd.f32 %v1917, %v1965
        %1967 = vmatmul.bf16.gmra.mxu0 %v1691
        %v1968 = vpop.f32.mrf.mxu0
        %v1969 = vadd.f32 %v1920, %v1968
        %v1970 = vpop.f32.mrf.mxu0
        %v1971 = vadd.f32 %v1922, %v1970
        %1972 = vmatmul.bf16.gmra.mxu0 %v1693
        %v1973 = vpop.f32.mrf.mxu0
        %v1974 = vadd.f32 %v1925, %v1973
        %v1975 = vpop.f32.mrf.mxu0
        %v1976 = vadd.f32 %v1927, %v1975
        %1977 = vmatmul.bf16.gmra.mxu0 %v1695
        %v1978 = vpop.f32.mrf.mxu0
        %v1979 = vadd.f32 %v1930, %v1978
        %v1980 = vpop.f32.mrf.mxu0
        %v1981 = vadd.f32 %v1932, %v1980
        %1982 = vmatmul.bf16.gmra.mxu0 %v1697
        %v1983 = vpop.f32.mrf.mxu0
        %v1984 = vadd.f32 %v1935, %v1983
        %v1985 = vpop.f32.mrf.mxu0
        %v1986 = vadd.f32 %v1937, %v1985
        %1987 = vmatmul.bf16.gmra.mxu0 %v1699
        %v1988 = vpop.f32.mrf.mxu0
        %v1989 = vadd.f32 %v1940, %v1988
        %v1990 = vpop.f32.mrf.mxu0
        %v1991 = vadd.f32 %v1942, %v1990
        %1992 = vmatmul.bf16.gmra.mxu0 %v1701
        %v1993 = vpop.f32.mrf.mxu0
        %v1994 = vadd.f32 %v1945, %v1993
        %v1995 = vpop.f32.mrf.mxu0
        %v1996 = vadd.f32 %v1947, %v1995
        %1997 = vdwg.mxu0
        %1998 = vmatpush.bf16.msra.mxu0 %v1851
        %1999 = vmatpush.bf16.msra.mxu0 %v1849
        %2000 = vmatpush.bf16.msra.mxu0 %v1847
        %2001 = vmatpush.bf16.msra.mxu0 %v1845
        %2002 = vmatpush.bf16.msra.mxu0 %v1843
        %2003 = vmatpush.bf16.msra.mxu0 %v1841
        %2004 = vmatpush.bf16.msra.mxu0 %v1839
        %2005 = vmatpush.bf16.msra.mxu0 %v1837
        %2006 = vmatmul.bf16.gmra.mxu0 %v1686
        %v2007 = vpop.f32.mrf.mxu0
        %v2008 = vadd.f32 %v1737, %v2007
        %v2009 = vpop.f32.mrf.mxu0
        %v2010 = vadd.f32 %v1737, %v2009
        %2011 = vmatmul.bf16.gmra.mxu0 %v1688
        %v2012 = vpop.f32.mrf.mxu0
        %v2013 = vadd.f32 %v1737, %v2012
        %v2014 = vpop.f32.mrf.mxu0
        %v2015 = vadd.f32 %v1737, %v2014
        %2016 = vmatmul.bf16.gmra.mxu0 %v1690
        %v2017 = vpop.f32.mrf.mxu0
        %v2018 = vadd.f32 %v1737, %v2017
        %v2019 = vpop.f32.mrf.mxu0
        %v2020 = vadd.f32 %v1737, %v2019
        %2021 = vmatmul.bf16.gmra.mxu0 %v1692
        %v2022 = vpop.f32.mrf.mxu0
        %v2023 = vadd.f32 %v1737, %v2022
        %v2024 = vpop.f32.mrf.mxu0
        %v2025 = vadd.f32 %v1737, %v2024
        %2026 = vmatmul.bf16.gmra.mxu0 %v1694
        %v2027 = vpop.f32.mrf.mxu0
        %v2028 = vadd.f32 %v1737, %v2027
        %v2029 = vpop.f32.mrf.mxu0
        %v2030 = vadd.f32 %v1737, %v2029
        %2031 = vmatmul.bf16.gmra.mxu0 %v1696
        %v2032 = vpop.f32.mrf.mxu0
        %v2033 = vadd.f32 %v1737, %v2032
        %v2034 = vpop.f32.mrf.mxu0
        %v2035 = vadd.f32 %v1737, %v2034
        %2036 = vmatmul.bf16.gmra.mxu0 %v1698
        %v2037 = vpop.f32.mrf.mxu0
        %v2038 = vadd.f32 %v1737, %v2037
        %v2039 = vpop.f32.mrf.mxu0
        %v2040 = vadd.f32 %v1737, %v2039
        %2041 = vmatmul.bf16.gmra.mxu0 %v1700
        %v2042 = vpop.f32.mrf.mxu0
        %v2043 = vadd.f32 %v1737, %v2042
        %v2044 = vpop.f32.mrf.mxu0
        %v2045 = vadd.f32 %v1737, %v2044
        %2046 = vdwg.mxu0
        %2047 = vmatpush.bf16.msra.mxu0 %v1867
        %2048 = vmatpush.bf16.msra.mxu0 %v1865
        %2049 = vmatpush.bf16.msra.mxu0 %v1863
        %2050 = vmatpush.bf16.msra.mxu0 %v1861
        %2051 = vmatpush.bf16.msra.mxu0 %v1859
        %2052 = vmatpush.bf16.msra.mxu0 %v1857
        %2053 = vmatpush.bf16.msra.mxu0 %v1855
        %2054 = vmatpush.bf16.msra.mxu0 %v1853
        %2055 = vmatmul.bf16.gmra.mxu0 %v1687
        %v2056 = vpop.f32.mrf.mxu0
        %v2057 = vadd.f32 %v2008, %v2056
        %v2058 = vpop.f32.mrf.mxu0
        %v2059 = vadd.f32 %v2010, %v2058
        %2060 = vmatmul.bf16.gmra.mxu0 %v1689
        %v2061 = vpop.f32.mrf.mxu0
        %v2062 = vadd.f32 %v2013, %v2061
        %v2063 = vpop.f32.mrf.mxu0
        %v2064 = vadd.f32 %v2015, %v2063
        %2065 = vmatmul.bf16.gmra.mxu0 %v1691
        %v2066 = vpop.f32.mrf.mxu0
        %v2067 = vadd.f32 %v2018, %v2066
        %v2068 = vpop.f32.mrf.mxu0
        %v2069 = vadd.f32 %v2020, %v2068
        %2070 = vmatmul.bf16.gmra.mxu0 %v1693
        %v2071 = vpop.f32.mrf.mxu0
        %v2072 = vadd.f32 %v2023, %v2071
        %v2073 = vpop.f32.mrf.mxu0
        %v2074 = vadd.f32 %v2025, %v2073
        %2075 = vmatmul.bf16.gmra.mxu0 %v1695
        %v2076 = vpop.f32.mrf.mxu0
        %v2077 = vadd.f32 %v2028, %v2076
        %v2078 = vpop.f32.mrf.mxu0
        %v2079 = vadd.f32 %v2030, %v2078
        %2080 = vmatmul.bf16.gmra.mxu0 %v1697
        %v2081 = vpop.f32.mrf.mxu0
        %v2082 = vadd.f32 %v2033, %v2081
        %v2083 = vpop.f32.mrf.mxu0
        %v2084 = vadd.f32 %v2035, %v2083
        %2085 = vmatmul.bf16.gmra.mxu0 %v1699
        %v2086 = vpop.f32.mrf.mxu0
        %v2087 = vadd.f32 %v2038, %v2086
        %v2088 = vpop.f32.mrf.mxu0
        %v2089 = vadd.f32 %v2040, %v2088
        %2090 = vmatmul.bf16.gmra.mxu0 %v1701
        %v2091 = vpop.f32.mrf.mxu0
        %v2092 = vadd.f32 %v2043, %v2091
        %v2093 = vpop.f32.mrf.mxu0
        %v2094 = vadd.f32 %v2045, %v2093
        %2095 = vdwg.mxu0
        %v2096 = vmax.f32 %v1959, 0.0
        %v2097 = vmax.f32 %v2057, 0.0
        %v2098 = vmax.f32 %v1961, 0.0
        %v2099 = vmax.f32 %v2059, 0.0
        %v2100 = vmax.f32 %v1964, 0.0
        %v2101 = vmax.f32 %v2062, 0.0
        %v2102 = vmax.f32 %v1966, 0.0
        %v2103 = vmax.f32 %v2064, 0.0
        %v2104 = vmax.f32 %v1969, 0.0
        %v2105 = vmax.f32 %v2067, 0.0
        %v2106 = vmax.f32 %v1971, 0.0
        %v2107 = vmax.f32 %v2069, 0.0
        %v2108 = vmax.f32 %v1974, 0.0
        %v2109 = vmax.f32 %v2072, 0.0
        %v2110 = vmax.f32 %v1976, 0.0
        %v2111 = vmax.f32 %v2074, 0.0
        %v2112 = vmax.f32 %v1979, 0.0
        %v2113 = vmax.f32 %v2077, 0.0
        %v2114 = vmax.f32 %v1981, 0.0
        %v2115 = vmax.f32 %v2079, 0.0
        %v2116 = vmax.f32 %v1984, 0.0
        %v2117 = vmax.f32 %v2082, 0.0
        %v2118 = vmax.f32 %v1986, 0.0
        %v2119 = vmax.f32 %v2084, 0.0
        %v2120 = vmax.f32 %v1989, 0.0
        %v2121 = vmax.f32 %v2087, 0.0
        %v2122 = vmax.f32 %v1991, 0.0
        %v2123 = vmax.f32 %v2089, 0.0
        %v2124 = vmax.f32 %v1994, 0.0
        %v2125 = vmax.f32 %v2092, 0.0
        %v2126 = vmax.f32 %v1996, 0.0
        %v2127 = vmax.f32 %v2094, 0.0
        %v2128 = vpack.c.bf16 %v2098, %v2096
        %v2129 = vpack.c.bf16 %v2099, %v2097
        %v2130 = vpack.c.bf16 %v2102, %v2100
        %v2131 = vpack.c.bf16 %v2103, %v2101
        %v2132 = vpack.c.bf16 %v2106, %v2104
        %v2133 = vpack.c.bf16 %v2107, %v2105
        %v2134 = vpack.c.bf16 %v2110, %v2108
        %v2135 = vpack.c.bf16 %v2111, %v2109
        %v2136 = vpack.c.bf16 %v2114, %v2112
        %v2137 = vpack.c.bf16 %v2115, %v2113
        %v2138 = vpack.c.bf16 %v2118, %v2116
        %v2139 = vpack.c.bf16 %v2119, %v2117
        %v2140 = vpack.c.bf16 %v2122, %v2120
        %v2141 = vpack.c.bf16 %v2123, %v2121
        %v2142 = vpack.c.bf16 %v2126, %v2124
        %v2143 = vpack.c.bf16 %v2127, %v2125
        %v2144 = vld [vmem:[#allocation13] sm:$0xf]
        %v2145 = vld [vmem:[#allocation13 + $0x4] sm:$0xf]
        %v2146 = vld [vmem:[#allocation13 + $0x8] sm:$0xf]
        %v2147 = vld [vmem:[#allocation13 + $0xc] sm:$0xf]
        %v2148 = vld [vmem:[#allocation13 + $0x10] sm:$0xf]
        %v2149 = vld [vmem:[#allocation13 + $0x14] sm:$0xf]
        %v2150 = vld [vmem:[#allocation13 + $0x18] sm:$0xf]
        %v2151 = vld [vmem:[#allocation13 + $0x1c] sm:$0xf]
        %v2152 = vld [vmem:[#allocation13 + $0x20] sm:$0xf]
        %v2153 = vld [vmem:[#allocation13 + $0x24] sm:$0xf]
        %v2154 = vld [vmem:[#allocation13 + $0x28] sm:$0xf]
        %v2155 = vld [vmem:[#allocation13 + $0x2c] sm:$0xf]
        %v2156 = vld [vmem:[#allocation13 + $0x30] sm:$0xf]
        %v2157 = vld [vmem:[#allocation13 + $0x34] sm:$0xf]
        %v2158 = vld [vmem:[#allocation13 + $0x38] sm:$0xf]
        %v2159 = vld [vmem:[#allocation13 + $0x3c] sm:$0xf]
        %v2160 = vld [vmem:[#allocation13 + $0x40] sm:$0xf]
        %v2161 = vld [vmem:[#allocation13 + $0x44] sm:$0xf]
        %v2162 = vld [vmem:[#allocation13 + $0x48] sm:$0xf]
        %v2163 = vld [vmem:[#allocation13 + $0x4c] sm:$0xf]
        %v2164 = vld [vmem:[#allocation13 + $0x50] sm:$0xf]
        %v2165 = vld [vmem:[#allocation13 + $0x54] sm:$0xf]
        %v2166 = vld [vmem:[#allocation13 + $0x58] sm:$0xf]
        %v2167 = vld [vmem:[#allocation13 + $0x5c] sm:$0xf]
        %v2168 = vld [vmem:[#allocation13 + $0x60] sm:$0xf]
        %v2169 = vld [vmem:[#allocation13 + $0x64] sm:$0xf]
        %v2170 = vld [vmem:[#allocation13 + $0x68] sm:$0xf]
        %v2171 = vld [vmem:[#allocation13 + $0x6c] sm:$0xf]
        %v2172 = vld [vmem:[#allocation13 + $0x70] sm:$0xf]
        %v2173 = vld [vmem:[#allocation13 + $0x74] sm:$0xf]
        %v2174 = vld [vmem:[#allocation13 + $0x78] sm:$0xf]
        %v2175 = vld [vmem:[#allocation13 + $0x7c] sm:$0xf]
        %v2176 = vld [vmem:[%s10] sm:$0x1]
        %v2178 = vperm.slane %v2176, 0
        %v2212 = vunpack.c.l.b16 %v2144
        %v2213 = vunpack.c.l.b16 %v2145
        %v2214 = vunpack.c.l.b16 %v2146
        %v2215 = vunpack.c.l.b16 %v2147
        %v2216 = vunpack.c.l.b16 %v2148
        %v2217 = vunpack.c.l.b16 %v2149
        %v2218 = vunpack.c.l.b16 %v2150
        %v2219 = vunpack.c.l.b16 %v2151
        %v2220 = vunpack.c.l.b16 %v2152
        %v2221 = vunpack.c.l.b16 %v2153
        %v2222 = vunpack.c.l.b16 %v2154
        %v2223 = vunpack.c.l.b16 %v2155
        %v2224 = vunpack.c.l.b16 %v2156
        %v2225 = vunpack.c.l.b16 %v2157
        %v2226 = vunpack.c.l.b16 %v2158
        %v2227 = vunpack.c.l.b16 %v2159
        %v2228 = vunpack.c.l.b16 %v2160
        %v2229 = vunpack.c.l.b16 %v2161
        %v2230 = vunpack.c.l.b16 %v2162
        %v2231 = vunpack.c.l.b16 %v2163
        %v2232 = vunpack.c.l.b16 %v2164
        %v2233 = vunpack.c.l.b16 %v2165
        %v2234 = vunpack.c.l.b16 %v2166
        %v2235 = vunpack.c.l.b16 %v2167
        %v2236 = vunpack.c.l.b16 %v2168
        %v2237 = vunpack.c.l.b16 %v2169
        %v2238 = vunpack.c.l.b16 %v2170
        %v2239 = vunpack.c.l.b16 %v2171
        %v2240 = vunpack.c.l.b16 %v2172
        %v2241 = vunpack.c.l.b16 %v2173
        %v2242 = vunpack.c.l.b16 %v2174
        %v2243 = vunpack.c.l.b16 %v2175
        %v2244 = vpack.c.b16 %v2213, %v2212
        %v2245 = vpack.c.b16 %v2215, %v2214
        %v2246 = vpack.c.b16 %v2217, %v2216
        %v2247 = vpack.c.b16 %v2219, %v2218
        %v2248 = vpack.c.b16 %v2221, %v2220
        %v2249 = vpack.c.b16 %v2223, %v2222
        %v2250 = vpack.c.b16 %v2225, %v2224
        %v2251 = vpack.c.b16 %v2227, %v2226
        %v2252 = vpack.c.b16 %v2229, %v2228
        %v2253 = vpack.c.b16 %v2231, %v2230
        %v2254 = vpack.c.b16 %v2233, %v2232
        %v2255 = vpack.c.b16 %v2235, %v2234
        %v2256 = vpack.c.b16 %v2237, %v2236
        %v2257 = vpack.c.b16 %v2239, %v2238
        %v2258 = vpack.c.b16 %v2241, %v2240
        %v2259 = vpack.c.b16 %v2243, %v2242
        %2276 = vmatpush.bf16.msra.mxu0 %v2251
        %2277 = vmatpush.bf16.msra.mxu0 %v2250
        %2278 = vmatpush.bf16.msra.mxu0 %v2249
        %2279 = vmatpush.bf16.msra.mxu0 %v2248
        %2280 = vmatpush.bf16.msra.mxu0 %v2247
        %2281 = vmatpush.bf16.msra.mxu0 %v2246
        %2282 = vmatpush.bf16.msra.mxu0 %v2245
        %2283 = vmatpush.bf16.msra.mxu0 %v2244
        %2284 = vmatmul.bf16.gmra.mxu0 %v2128
        %v2285 = vpop.f32.mrf.mxu0
        %v2286 = vadd.f32 %v2178, %v2285
        %v2287 = vpop.f32.mrf.mxu0
        %v2288 = vadd.f32 %v2178, %v2287
        %2289 = vmatmul.bf16.gmra.mxu0 %v2130
        %v2290 = vpop.f32.mrf.mxu0
        %v2291 = vadd.f32 %v2178, %v2290
        %v2292 = vpop.f32.mrf.mxu0
        %v2293 = vadd.f32 %v2178, %v2292
        %2294 = vmatmul.bf16.gmra.mxu0 %v2132
        %v2295 = vpop.f32.mrf.mxu0
        %v2296 = vadd.f32 %v2178, %v2295
        %v2297 = vpop.f32.mrf.mxu0
        %v2298 = vadd.f32 %v2178, %v2297
        %2299 = vmatmul.bf16.gmra.mxu0 %v2134
        %v2300 = vpop.f32.mrf.mxu0
        %v2301 = vadd.f32 %v2178, %v2300
        %v2302 = vpop.f32.mrf.mxu0
        %v2303 = vadd.f32 %v2178, %v2302
        %2304 = vmatmul.bf16.gmra.mxu0 %v2136
        %v2305 = vpop.f32.mrf.mxu0
        %v2306 = vadd.f32 %v2178, %v2305
        %v2307 = vpop.f32.mrf.mxu0
        %v2308 = vadd.f32 %v2178, %v2307
        %2309 = vmatmul.bf16.gmra.mxu0 %v2138
        %v2310 = vpop.f32.mrf.mxu0
        %v2311 = vadd.f32 %v2178, %v2310
        %v2312 = vpop.f32.mrf.mxu0
        %v2313 = vadd.f32 %v2178, %v2312
        %2314 = vmatmul.bf16.gmra.mxu0 %v2140
        %v2315 = vpop.f32.mrf.mxu0
        %v2316 = vadd.f32 %v2178, %v2315
        %v2317 = vpop.f32.mrf.mxu0
        %v2318 = vadd.f32 %v2178, %v2317
        %2319 = vmatmul.bf16.gmra.mxu0 %v2142
        %v2320 = vpop.f32.mrf.mxu0
        %v2321 = vadd.f32 %v2178, %v2320
        %v2322 = vpop.f32.mrf.mxu0
        %v2323 = vadd.f32 %v2178, %v2322
        %2324 = vdwg.mxu0
        %2325 = vmatpush.bf16.msra.mxu0 %v2259
        %2326 = vmatpush.bf16.msra.mxu0 %v2258
        %2327 = vmatpush.bf16.msra.mxu0 %v2257
        %2328 = vmatpush.bf16.msra.mxu0 %v2256
        %2329 = vmatpush.bf16.msra.mxu0 %v2255
        %2330 = vmatpush.bf16.msra.mxu0 %v2254
        %2331 = vmatpush.bf16.msra.mxu0 %v2253
        %2332 = vmatpush.bf16.msra.mxu0 %v2252
        %2333 = vmatmul.bf16.gmra.mxu0 %v2129
        %v2334 = vpop.f32.mrf.mxu0
        %v2335 = vadd.f32 %v2286, %v2334
        %v2336 = vpop.f32.mrf.mxu0
        %v2337 = vadd.f32 %v2288, %v2336
        %2338 = vmatmul.bf16.gmra.mxu0 %v2131
        %v2339 = vpop.f32.mrf.mxu0
        %v2340 = vadd.f32 %v2291, %v2339
        %v2341 = vpop.f32.mrf.mxu0
        %v2342 = vadd.f32 %v2293, %v2341
        %2343 = vmatmul.bf16.gmra.mxu0 %v2133
        %v2344 = vpop.f32.mrf.mxu0
        %v2345 = vadd.f32 %v2296, %v2344
        %v2346 = vpop.f32.mrf.mxu0
        %v2347 = vadd.f32 %v2298, %v2346
        %2348 = vmatmul.bf16.gmra.mxu0 %v2135
        %v2349 = vpop.f32.mrf.mxu0
        %v2350 = vadd.f32 %v2301, %v2349
        %v2351 = vpop.f32.mrf.mxu0
        %v2352 = vadd.f32 %v2303, %v2351
        %2353 = vmatmul.bf16.gmra.mxu0 %v2137
        %v2354 = vpop.f32.mrf.mxu0
        %v2355 = vadd.f32 %v2306, %v2354
        %v2356 = vpop.f32.mrf.mxu0
        %v2357 = vadd.f32 %v2308, %v2356
        %2358 = vmatmul.bf16.gmra.mxu0 %v2139
        %v2359 = vpop.f32.mrf.mxu0
        %v2360 = vadd.f32 %v2311, %v2359
        %v2361 = vpop.f32.mrf.mxu0
        %v2362 = vadd.f32 %v2313, %v2361
        %2363 = vmatmul.bf16.gmra.mxu0 %v2141
        %v2364 = vpop.f32.mrf.mxu0
        %v2365 = vadd.f32 %v2316, %v2364
        %v2366 = vpop.f32.mrf.mxu0
        %v2367 = vadd.f32 %v2318, %v2366
        %2368 = vmatmul.bf16.gmra.mxu0 %v2143
        %v2369 = vpop.f32.mrf.mxu0
        %v2370 = vadd.f32 %v2321, %v2369
        %v2371 = vpop.f32.mrf.mxu0
        %v2372 = vadd.f32 %v2323, %v2371
        %2373 = vdwg.mxu0
        %2374 = vst [vmem:[%s503] sm:$0xff] %v2335
        %2375 = vst [vmem:[%s503 + $0x8] sm:$0xff] %v2337
        %2376 = vst [vmem:[%s503 + $0x10] sm:$0xff] %v2340
        %2377 = vst [vmem:[%s503 + $0x18] sm:$0xff] %v2342
        %2378 = vst [vmem:[%s503 + $0x20] sm:$0xff] %v2345
        %2379 = vst [vmem:[%s503 + $0x28] sm:$0xff] %v2347
        %2380 = vst [vmem:[%s503 + $0x30] sm:$0xff] %v2350
        %2381 = vst [vmem:[%s503 + $0x38] sm:$0xff] %v2352
        %2382 = vst [vmem:[%s503 + $0x40] sm:$0xff] %v2355
        %2383 = vst [vmem:[%s503 + $0x48] sm:$0xff] %v2357
        %2384 = vst [vmem:[%s503 + $0x50] sm:$0xff] %v2360
        %2385 = vst [vmem:[%s503 + $0x58] sm:$0xff] %v2362
        %2386 = vst [vmem:[%s503 + $0x60] sm:$0xff] %v2365
        %2387 = vst [vmem:[%s503 + $0x68] sm:$0xff] %v2367
        %2388 = vst [vmem:[%s503 + $0x70] sm:$0xff] %v2370
        %2389 = vst [vmem:[%s503 + $0x78] sm:$0xff] %v2372
        %s2390 = sand.u32 %s275, 1
        %s2391 = scalar_lea.sflag [#allocation4], %s2390
        %s2392 = sand.u32 %s275, 1
        %s2393 = smul.addr %s2392, 128
        %s2394 = scalar_lea.vmem [#allocation14], %s2393
        // Predicated region
        $region93: #{tpu_custom_call.1} parent=63 // pred_check
          %p2395 = pneg %p285
        $region94: #{tpu_custom_call.1} parent=63 // pred_check_branch
          %2397 = sbr.rel (%p2395) target = $region96
        $region95: #{tpu_custom_call.1} parent=63 // pred_region
          %s2398 = smul.u32 16, %s31
          %2400 = vsyncadd %s2391, 0
          %s2401 = smul.addr %s2398, 8
          %s2402 = scalar_lea.hbm %s11, %s2401
          %s2403 = sshll.u32 %s2394, 4
          %s2404 = int_to_ptr.vmem [resolvable:$true] %s2403
          %s2405 = sshll.u32 %s2402, 4
          %s2406 = int_to_ptr.hbm [resolvable:$true] %s2405
          %2411 = dma.vmem_to_hbm [thread:$0]  %s2404, 2048, %s2406, %s2391, 128, 128, 8
        $region96: #{tpu_custom_call.1} parent=63 // pred_fallthru
          _
      $region64: #{tpu_custom_call.1} parent=5 // pred_fallthru
        _
      %p2412 = scmp.le.s32.totalorder 2, %s26
      // Predicated region
      $region97: #{tpu_custom_call.1} parent=5 // pred_check
        %p2413 = pneg %p2412
      $region98: #{tpu_custom_call.1} parent=5 // pred_check_branch
        %2415 = sbr.rel (%p2413) target = $region100
      $region99: #{tpu_custom_call.1} parent=5 // pred_region
        %s2416 = ssub.s32 %s26, 2
        // Predicated region
        $region101: #{tpu_custom_call.1} parent=99 // pred_check
          %p2417 = pneg %p291
        $region102: #{tpu_custom_call.1} parent=99 // pred_check_branch
          %2419 = sbr.rel (%p2417) target = $region104
        $region103: #{tpu_custom_call.1} parent=99 // pred_region
          %s2420 = sand.u32 %s276, 1
          %s2421 = scalar_lea.sflag [#allocation4], %s2420
          %s2422 = sand.u32 %s276, 1
          %s2423 = smul.addr %s2422, 128
          %s2424 = scalar_lea.vmem [#allocation14], %s2423
          %2426 = dma.done %s2421, 2048
        $region104: #{tpu_custom_call.1} parent=99 // pred_fallthru
          _
      $region100: #{tpu_custom_call.1} parent=5 // pred_fallthru
        _
    $region6: #{tpu_custom_call.1} parent=1 // loop_footer
      %s30 = sadd.s32 1, %s26
    $region7: #{tpu_custom_call.1} parent=1 // loop_footer_branch
      %25 = sbr.rel target = $region3
    $region8: #{tpu_custom_call.1} parent=1 // loop_exit
      _
    %2427 = vsyncpa [#allocation3], 1
    %s2428 = scalar_lea.sflag [#allocation3], 1
    %2429 = vsyncpa %s2428, 1
    %2430 = vsyncpa [#allocation6], 1
    %2431 = vsyncpa [#allocation9], 1
    %2432 = vsyncpa [#allocation12], 1
    %2433 = vsyncpa [#allocation4], 1
    %s2434 = scalar_lea.sflag [#allocation4], 1
    %2435 = vsyncpa %s2434, 1

</llo_original>
